<compile_context>
chip_gen: v7x
topology: tpu7x:2x2x1
jax: 0.10.0
libtpu: 0.0.40
codegen_flags: <defaults>
</compile_context>

<pallas_src>
import functools

import jax
import jax.numpy as jnp
from jax.experimental import pallas as pl
from jax.experimental.pallas import tpu as pltpu


def _round_up(x, m):
    return ((x + m - 1) // m) * m


def nt_xent_kernel(zrow_ref, zcol_ref, out_ref, m_ref, l_ref,
                   *, n_valid, n_pad):
    i = pl.program_id(0)          # row-tile index ("parallel")
    j = pl.program_id(1)          # col-tile index (reduction, "arbitrary")
    nj = pl.num_programs(1)

    TM = zrow_ref.shape[0]
    TN = zcol_ref.shape[0]
    NEG = jnp.float32(-1e30)

    @pl.when(j == 0)
    def _init():
        m_ref[...] = jnp.full_like(m_ref, NEG)
        l_ref[...] = jnp.zeros_like(l_ref)

    # (TM, TN) tile of cos-similarity / T, straight off the MXU, kept as a
    # value (no scratch round trips).  Inputs are already normalized and
    # scaled by 1/sqrt(T) in the wrapper.
    s = jax.lax.dot_general(
        zrow_ref[...], zcol_ref[...], (((1,), (1,)), ((), ())),
        preferred_element_type=jnp.float32,
        precision=jax.lax.Precision.HIGHEST)

    row_start = i * TM
    col_start = j * TN
    rows = row_start + jax.lax.broadcasted_iota(jnp.int32, (TM, TN), 0)
    cols = col_start + jax.lax.broadcasted_iota(jnp.int32, (TM, TN), 1)
    masked = rows == cols                       # self-similarity
    if n_pad > n_valid:                         # static: padded tail columns
        masked = masked | (cols >= n_valid)
    s = jnp.where(masked, NEG, s)

    # Online logsumexp update over column tiles.
    m_prev = m_ref[...]
    m_new = jnp.maximum(m_prev, jnp.max(s, axis=-1, keepdims=True))
    if n_pad > n_valid:
        # Guard fully-masked tiles (exp(NEG - NEG) == 1) when padding exists.
        p = jnp.where(s > jnp.float32(-1e29), jnp.exp(s - m_new), 0.0)
    else:
        p = jnp.exp(s - m_new)
    l_ref[...] = (jnp.exp(m_prev - m_new) * l_ref[...]
                  + jnp.sum(p, axis=-1, keepdims=True))
    m_ref[...] = m_new

    @pl.when(j == nj - 1)
    def _finalize():
        out_ref[...] = m_ref[...] + jnp.log(l_ref[...])   # per-row LSE


def nt_xent_loss(z_i, z_j, temperature, *, tm=512, tn=1024):
    """NT-Xent loss for a positive pair of embedding batches z_i, z_j : (B, D)."""
    assert z_i.shape == z_j.shape and z_i.ndim == 2
    assert temperature > 0
    B, D = z_i.shape
    N = 2 * B

    # ---- tile geometry: lane-dense padding of the similarity dimension ----
    N_pad = _round_up(N, 128)

    # Column tile (lane dim of the sim tile): multiple of 128 dividing N_pad.
    if N_pad <= tn:
        TN = N_pad
    else:
        TN = 128
        for cand in range((tn // 128) * 128, 127, -128):
            if N_pad % cand == 0:
                TN = cand
                break

    # Row tile (sublane dim): multiple of 8 dividing N_pad; keep >= 2 row
    # tiles so the "parallel" axis can shard across v7x's two TensorCores.
    cap = (min(tm, N_pad // 2) // 8) * 8
    TM = 8
    for cand in range(cap, 7, -8):
        if N_pad % cand == 0:
            TM = cand
            break
    num_i = N_pad // TM
    num_j = N_pad // TN

    # ---- wrapper-side prep (one fused pass over N*D elements) ----
    # Normalize once; fold the temperature in as a 1/sqrt(T) scale so that
    # zs @ zs.T == cos(z_a, z_b) / T and the kernel needs no scaling at all.
    scale = jnp.float32(float(temperature) ** -0.5)
    z = jnp.concatenate([z_i, z_j], axis=0).astype(jnp.float32)
    norms = jnp.sqrt(jnp.sum(z * z, axis=-1, keepdims=True))
    zs = (z / jnp.maximum(norms, jnp.float32(1e-8))) * scale   # (N, D)

    # Positive logits: tiny O(N*D) row-wise dot, done here instead of in-kernel.
    pos_half = jnp.sum(zs[:B] * zs[B:], axis=-1)               # sim(i, i+B)/T
    pos_sum = 2.0 * jnp.sum(pos_half)                          # both directions

    pad = N_pad - N
    if pad:
        zs = jnp.concatenate([zs, jnp.zeros((pad, D), jnp.float32)], axis=0)

    # ---- generation-aware VMEM budget (v7x: 64 MiB/TC; v5e/v6e: 128 MiB) ----
    try:
        vmem_cap = int(pltpu.get_tpu_info().vmem_capacity_bytes)
    except Exception:
        vmem_cap = 64 * 1024 * 1024
    vmem_limit = int(min(vmem_cap // 2, 48 * 1024 * 1024))

    kernel = functools.partial(nt_xent_kernel, n_valid=N, n_pad=N_pad)

    grid_spec = pltpu.PrefetchScalarGridSpec(
        num_scalar_prefetch=0,
        grid=(num_i, num_j),
        in_specs=[
            pl.BlockSpec((TM, D), lambda i, j: (i, 0)),   # row tile (resident over j)
            pl.BlockSpec((TN, D), lambda i, j: (j, 0)),   # col tile
        ],
        out_specs=pl.BlockSpec((TM, 1), lambda i, j: (i, 0)),
        scratch_shapes=[
            pltpu.VMEM((TM, 1), jnp.float32),    # m (running max)
            pltpu.VMEM((TM, 1), jnp.float32),    # l (running sum)
        ],
    )

    per_row = pl.pallas_call(
        kernel,
        out_shape=jax.ShapeDtypeStruct((N_pad, 1), jnp.float32),
        grid_spec=grid_spec,
        compiler_params=pltpu.CompilerParams(
            dimension_semantics=("parallel", "arbitrary"),
            vmem_limit_bytes=vmem_limit),
    )(zs, zs)

    # Padded rows live at [N, N_pad): just slice them away.
    lse_sum = jnp.sum(per_row[:N, 0])
    return (lse_sum - pos_sum) / jnp.float32(N)


def nt_xent_reference(z_i, z_j, temperature):
    """Plain-JAX reference mirroring the PyTorch forward."""
    B = z_i.shape[0]
    N = 2 * B
    z = jnp.concatenate([z_i, z_j], axis=0).astype(jnp.float32)
    zn = z / jnp.maximum(jnp.linalg.norm(z, axis=-1, keepdims=True), 1e-8)
    sim = jnp.matmul(zn, zn.T, precision=jax.lax.Precision.HIGHEST) / temperature
    idx = jnp.arange(N)
    partner = jnp.where(idx < B, idx + B, idx - B)
    pos = sim[idx, partner]
    sim_m = jnp.where(jnp.eye(N, dtype=bool), -jnp.inf, sim)
    lse = jax.scipy.special.logsumexp(sim_m, axis=-1)
    return jnp.sum(lse - pos) / N


if __name__ == "__main__":
    key = jax.random.PRNGKey(0)

    # (batch, feat_dim, temperature): small primary case, a padded case,
    # a multi-row-tile case, and a multi-row/column-tile case.
    cases = [(8, 32, 0.5), (10, 32, 0.2), (384, 32, 0.5), (640, 64, 0.5)]
    for batch_size, feat_dim, temperature in cases:
        key, k1, k2 = jax.random.split(key, 3)
        z_i = jax.random.normal(k1, (batch_size, feat_dim), dtype=jnp.float32)
        z_j = jax.random.normal(k2, (batch_size, feat_dim), dtype=jnp.float32)

        loss = nt_xent_loss(z_i, z_j, temperature)
        jax.block_until_ready(loss)

        ref = nt_xent_reference(z_i, z_j, temperature)
        assert jnp.allclose(loss, ref, rtol=1e-4, atol=1e-4), (batch_size, loss, ref)

    print("KERNEL_OK")
</pallas_src>

<mosaic_0001>
module attributes {stable_mosaic.version = 11 : i64} {
  func.func @nt_xent_kernel(%arg0: i32, %arg1: i32, %arg2: memref<64x32xf32, #tpu.memory_space<vmem>>, %arg3: memref<128x32xf32, #tpu.memory_space<vmem>>, %arg4: memref<64x1xf32, #tpu.memory_space<vmem>>, %arg5: memref<64x1xf32, #tpu.memory_space<vmem>>, %arg6: memref<64x1xf32, #tpu.memory_space<vmem>>) attributes {dimension_semantics = [#tpu.dimension_semantics<parallel>, #tpu.dimension_semantics<arbitrary>], iteration_bounds = array<i64: 2, 1>, scalar_prefetch = 0 : i64, scratch_operands = 2 : i64, tpu.core_type = #tpu.core_type<tc>, window_params = [{transform_indices = @transform_0, window_bounds = array<i64: 64, 32>}, {transform_indices = @transform_1, window_bounds = array<i64: 128, 32>}, {transform_indices = @transform_2, window_bounds = array<i64: 64, 1>}]} {
    %c0_i32 = arith.constant 0 : i32
    %0 = arith.cmpi eq, %arg1, %c0_i32 : i32
    %1 = arith.extui %0 : i1 to i32
    %cst = arith.constant -1.000000e+30 : f32
    %c0_i32_0 = arith.constant 0 : i32
    %2 = arith.cmpi ne, %1, %c0_i32_0 : i32
    scf.if %2 {
      %43 = vector.broadcast %cst : f32 to vector<64x1xf32>
      %c0_20 = arith.constant 0 : index
      %c0_21 = arith.constant 0 : index
      %44 = vector.load %arg5[%c0_20, %c0_21] : memref<64x1xf32, #tpu.memory_space<vmem>>, vector<64x1xf32>
      tpu.vector_store %arg5[%c0_20, %c0_21], %43 {strides = array<i32>} : memref<64x1xf32, #tpu.memory_space<vmem>>, vector<64x1xf32>,
      %cst_22 = arith.constant 0.000000e+00 : f32
      %45 = vector.broadcast %cst_22 : f32 to vector<64x1xf32>
      %c0_23 = arith.constant 0 : index
      %c0_24 = arith.constant 0 : index
      %46 = vector.load %arg6[%c0_23, %c0_24] : memref<64x1xf32, #tpu.memory_space<vmem>>, vector<64x1xf32>
      tpu.vector_store %arg6[%c0_23, %c0_24], %45 {strides = array<i32>} : memref<64x1xf32, #tpu.memory_space<vmem>>, vector<64x1xf32>,
    } else {
    }
    %c0 = arith.constant 0 : index
    %c0_1 = arith.constant 0 : index
    %3 = vector.load %arg2[%c0, %c0_1] : memref<64x32xf32, #tpu.memory_space<vmem>>, vector<64x32xf32>
    %c0_2 = arith.constant 0 : index
    %c0_3 = arith.constant 0 : index
    %4 = vector.load %arg3[%c0_2, %c0_3] : memref<128x32xf32, #tpu.memory_space<vmem>>, vector<128x32xf32>
    %cst_4 = arith.constant dense<0.000000e+00> : vector<64x128xf32>
    %5 = tpu.matmul %3, %4, %cst_4 {dimension_numbers = #tpu.dot_dimension_numbers<[1], [1], [0], [0], [0, 0, 1, 0], [], []>, precision = #tpu.contract_precision<fp32>} : vector<64x32xf32>, vector<128x32xf32>, vector<64x128xf32> -> vector<64x128xf32>
    %c64_i32 = arith.constant 64 : i32
    %6 = arith.muli %arg0, %c64_i32 : i32
    %c128_i32 = arith.constant 128 : i32
    %7 = arith.muli %arg1, %c128_i32 : i32
    %8 = tpu.iota {dimensions = array<i32: 0>} : vector<64x128xi32>
    %9 = vector.broadcast %6 : i32 to vector<64x128xi32>
    %10 = arith.addi %9, %8 : vector<64x128xi32>
    %11 = tpu.iota {dimensions = array<i32: 1>} : vector<64x128xi32>
    %12 = vector.broadcast %7 : i32 to vector<64x128xi32>
    %13 = arith.addi %12, %11 : vector<64x128xi32>
    %14 = arith.cmpi eq, %10, %13 : vector<64x128xi32>
    %c16_i32 = arith.constant 16 : i32
    %15 = vector.broadcast %c16_i32 : i32 to vector<64x128xi32>
    %16 = arith.cmpi sge, %13, %15 : vector<64x128xi32>
    %17 = arith.ori %14, %16 : vector<64x128xi1>
    %cst_5 = arith.constant -1.000000e+30 : f32
    %18 = vector.broadcast %cst_5 : f32 to vector<64x128xf32>
    %19 = arith.select %17, %18, %5 : vector<64x128xi1>, vector<64x128xf32>
    %c0_6 = arith.constant 0 : index
    %c0_7 = arith.constant 0 : index
    %20 = vector.load %arg5[%c0_6, %c0_7] : memref<64x1xf32, #tpu.memory_space<vmem>>, vector<64x1xf32>
    %cst_8 = arith.constant dense<0xFF800000> : vector<64xf32>
    %21 = vector.multi_reduction <maximumf>, %19, %cst_8 [1] : vector<64x128xf32> to vector<64xf32>
    %22 = vector.shape_cast %21 : vector<64xf32> to vector<64x1xf32>
    %23 = arith.maximumf %20, %22 : vector<64x1xf32>
    %cst_9 = arith.constant -1.000000e+29 : f32
    %24 = vector.broadcast %cst_9 : f32 to vector<64x128xf32>
    %25 = arith.cmpf ogt, %19, %24 : vector<64x128xf32>
    %26 = vector.broadcast %23 : vector<64x1xf32> to vector<64x128xf32>
    %27 = arith.subf %19, %26 : vector<64x128xf32>
    %28 = math.exp %27 : vector<64x128xf32>
    %cst_10 = arith.constant 0.000000e+00 : f32
    %29 = vector.broadcast %cst_10 : f32 to vector<64x128xf32>
    %30 = arith.select %25, %28, %29 : vector<64x128xi1>, vector<64x128xf32>
    %31 = arith.subf %20, %23 : vector<64x1xf32>
    %32 = math.exp %31 : vector<64x1xf32>
    %c0_11 = arith.constant 0 : index
    %c0_12 = arith.constant 0 : index
    %33 = vector.load %arg6[%c0_11, %c0_12] : memref<64x1xf32, #tpu.memory_space<vmem>>, vector<64x1xf32>
    %34 = arith.mulf %32, %33 : vector<64x1xf32>
    %cst_13 = arith.constant dense<0.000000e+00> : vector<64xf32>
    %35 = vector.multi_reduction <add>, %30, %cst_13 [1] : vector<64x128xf32> to vector<64xf32>
    %36 = vector.shape_cast %35 : vector<64xf32> to vector<64x1xf32>
    %37 = arith.addf %34, %36 : vector<64x1xf32>
    %c0_14 = arith.constant 0 : index
    %c0_15 = arith.constant 0 : index
    %38 = vector.load %arg6[%c0_14, %c0_15] : memref<64x1xf32, #tpu.memory_space<vmem>>, vector<64x1xf32>
    tpu.vector_store %arg6[%c0_14, %c0_15], %37 {strides = array<i32>} : memref<64x1xf32, #tpu.memory_space<vmem>>, vector<64x1xf32>,
    %c0_16 = arith.constant 0 : index
    %c0_17 = arith.constant 0 : index
    %39 = vector.load %arg5[%c0_16, %c0_17] : memref<64x1xf32, #tpu.memory_space<vmem>>, vector<64x1xf32>
    tpu.vector_store %arg5[%c0_16, %c0_17], %23 {strides = array<i32>} : memref<64x1xf32, #tpu.memory_space<vmem>>, vector<64x1xf32>,
    %c0_i32_18 = arith.constant 0 : i32
    %40 = arith.cmpi eq, %arg1, %c0_i32_18 : i32
    %41 = arith.extui %40 : i1 to i32
    %c0_i32_19 = arith.constant 0 : i32
    %42 = arith.cmpi ne, %41, %c0_i32_19 : i32
    scf.if %42 {
      %c0_20 = arith.constant 0 : index
      %c0_21 = arith.constant 0 : index
      %43 = vector.load %arg5[%c0_20, %c0_21] : memref<64x1xf32, #tpu.memory_space<vmem>>, vector<64x1xf32>
      %c0_22 = arith.constant 0 : index
      %c0_23 = arith.constant 0 : index
      %44 = vector.load %arg6[%c0_22, %c0_23] : memref<64x1xf32, #tpu.memory_space<vmem>>, vector<64x1xf32>
      %45 = math.log %44 : vector<64x1xf32>
      %46 = arith.addf %43, %45 : vector<64x1xf32>
      %c0_24 = arith.constant 0 : index
      %c0_25 = arith.constant 0 : index
      %47 = vector.load %arg4[%c0_24, %c0_25] : memref<64x1xf32, #tpu.memory_space<vmem>>, vector<64x1xf32>
      tpu.vector_store %arg4[%c0_24, %c0_25], %46 {strides = array<i32>} : memref<64x1xf32, #tpu.memory_space<vmem>>, vector<64x1xf32>,
    } else {
    }
    return
  }
  func.func @transform_0(%arg0: i32, %arg1: i32) -> (i32, i32) {
    %c0_i32 = arith.constant 0 : i32
    %c0_i32_0 = arith.constant 0 : i32
    return %arg0, %c0_i32 : i32, i32
  }
  func.func @transform_1(%arg0: i32, %arg1: i32) -> (i32, i32) {
    %c0_i32 = arith.constant 0 : i32
    %c0_i32_0 = arith.constant 0 : i32
    return %arg1, %c0_i32 : i32, i32
  }
  func.func @transform_2(%arg0: i32, %arg1: i32) -> (i32, i32) {
    %c0_i32 = arith.constant 0 : i32
    %c0_i32_0 = arith.constant 0 : i32
    return %arg0, %c0_i32 : i32, i32
  }
}

</mosaic_0001>

<llo_original>
// kernel: tpu_custom_call.1
$region0: #{tpu_custom_call.1}
  #allocation0 [shape = 'u32[]', space=smem, size = 0x4, offset = 0x4, fixed_abs, tag = 'smem constant byte address 0x4 - core index']
  #allocation1 [shape = 'u32[144,128]{1,0:T(1,128)}', space=vmem, size = 0x12000, scoped, tag = 'internal scratch']
  #allocation2 [shape = 'f32[64,1]{1,0:T(8,128)}', space=vmem, size = 0x8000, scoped, tag = 'scratch operand']
  #allocation3 [shape = 'f32[64,1]{1,0:T(8,128)}', space=vmem, size = 0x8000, scoped, tag = 'scratch operand']
  %s0 = inlined_call_operand.vmem [shape: f32[128,32], index: 0, kind: input, shape index: {}]
  %s1 = inlined_call_operand.vmem [shape: f32[128,32], index: 1, kind: input, shape index: {}]
  %s2 = inlined_call_operand.vmem [shape: f32[128,1], index: 2, kind: output, shape index: {}]
  %s3 = sld [smem:[#allocation0]]
  $region49: #{tpu_custom_call.1} parent=0
    _
  %s5 = ssub.s32 1, %s3
  %s6 = scalar_select 0, %s5, %s3
  loop: start=0, step=1, limit=4
  $region2: #{tpu_custom_call.1} parent=0 // loop_pre_header
    _
  $region3: #{tpu_custom_call.1} parent=0 // loop_header
    %s8 = sphi 0, %s12
    %p9 = scmp.ge.s32.totalorder %s8, 4
    %s15 = sphi 0, %s27
    %s16 = sphi 0, %s23
    %s17 = sphi 0, %s15
    %s18 = sphi 0, %s16
    %s19 = sphi 0, %s17
    %s20 = sphi 0, %s18
    %s30 = sphi 0, %s32
    %s33 = sphi 0, %s30
    %s34 = sphi 0, %s33
    %s50 = sphi 0, %s34
    %s56 = sphi 0, %s58
    %s59 = sphi 0, %s56
    %s60 = sphi 0, %s59
    %s76 = sphi 0, %s60
    %s82 = sphi 0, %s84
    %s85 = sphi 0, %s82
    %s86 = sphi 0, %s85
    %s102 = sphi 0, %s86
  $region4: #{tpu_custom_call.1} parent=0 // loop_header_branch
    %11 = sbr.rel (%p9) target = $region8
  $region5: #{tpu_custom_call.1} parent=0 // loop_body
    %s13 = ssub.s32 %s8, 1
    %s14 = ssub.s32 %s8, 2
    %s21 = sadd.s32 1, %s16
    %p22 = scmp.ge.s32.totalorder %s21, 1
    %s23 = scalar_select %p22, 0, %s21
    %s24 = sadd.s32 1, %s15
    %s25 = scalar_select %p22, %s24, %s15
    %p26 = scmp.ge.s32.totalorder %s25, 2
    %s27 = scalar_select %p26, 0, %s25
    %s28 = ssub.s32 %s15, %s27
    %p29 = scmp.eq.s32.totalorder %s28, 0
    %s31 = sadd.s32 %s30, 1
    %s32 = scalar_select %p29, %s30, %s31
    %p35 = pneg %p29
    %p36 = scmp.eq.s32.totalorder %s8, 1
    %p37 = por %p35, %p36
    %p38 = scmp.ne.s32.totalorder %s30, %s33
    %p39 = scmp.eq.s32.totalorder %s8, 0
    %p40 = por %p38, %p39
    %p41 = scmp.ne.s32.totalorder %s30, %s33
    %p42 = scmp.eq.s32.totalorder %s13, 1
    %p43 = por %p41, %p42
    %p44 = scmp.ne.s32.totalorder %s33, %s34
    %p45 = scmp.eq.s32.totalorder %s13, 0
    %p46 = por %p44, %p45
    %p47 = scmp.ne.s32.totalorder %s33, %s34
    %p48 = scmp.eq.s32.totalorder %s14, 1
    %p49 = por %p47, %p48
    %p51 = scmp.ne.s32.totalorder %s34, %s50
    %p52 = scmp.eq.s32.totalorder %s14, 0
    %p53 = por %p51, %p52
    %s54 = ssub.s32 %s16, %s23
    %p55 = scmp.eq.s32.totalorder %s54, 0
    %s57 = sadd.s32 %s56, 1
    %s58 = scalar_select %p55, %s56, %s57
    %p61 = pneg %p55
    %p62 = scmp.eq.s32.totalorder %s8, 1
    %p63 = por %p61, %p62
    %p64 = scmp.ne.s32.totalorder %s56, %s59
    %p65 = scmp.eq.s32.totalorder %s8, 0
    %p66 = por %p64, %p65
    %p67 = scmp.ne.s32.totalorder %s56, %s59
    %p68 = scmp.eq.s32.totalorder %s13, 1
    %p69 = por %p67, %p68
    %p70 = scmp.ne.s32.totalorder %s59, %s60
    %p71 = scmp.eq.s32.totalorder %s13, 0
    %p72 = por %p70, %p71
    %p73 = scmp.ne.s32.totalorder %s59, %s60
    %p74 = scmp.eq.s32.totalorder %s14, 1
    %p75 = por %p73, %p74
    %p77 = scmp.ne.s32.totalorder %s60, %s76
    %p78 = scmp.eq.s32.totalorder %s14, 0
    %p79 = por %p77, %p78
    %s80 = ssub.s32 %s15, %s27
    %p81 = scmp.eq.s32.totalorder %s80, 0
    %s83 = sadd.s32 %s82, 1
    %s84 = scalar_select %p81, %s82, %s83
    %p87 = pneg %p81
    %p88 = scmp.eq.s32.totalorder %s8, 1
    %p89 = por %p87, %p88
    %p90 = scmp.ne.s32.totalorder %s82, %s85
    %p91 = scmp.eq.s32.totalorder %s8, 0
    %p92 = por %p90, %p91
    %p93 = scmp.ne.s32.totalorder %s82, %s85
    %p94 = scmp.eq.s32.totalorder %s13, 1
    %p95 = por %p93, %p94
    %p96 = scmp.ne.s32.totalorder %s85, %s86
    %p97 = scmp.eq.s32.totalorder %s13, 0
    %p98 = por %p96, %p97
    %p99 = scmp.ne.s32.totalorder %s85, %s86
    %p100 = scmp.eq.s32.totalorder %s14, 1
    %p101 = por %p99, %p100
    %p103 = scmp.ne.s32.totalorder %s86, %s102
    %p104 = scmp.eq.s32.totalorder %s14, 0
    %p105 = por %p103, %p104
    %p106 = scmp.le.s32.totalorder 1, %s8
    %p107 = scmp.lt.s32.totalorder %s8, 3
    %p108 = pnand %p106, %p107
    %p109 = pneg %p108
    // Predicated region
    $region9: #{tpu_custom_call.1} parent=5 // pred_check
      _
    $region10: #{tpu_custom_call.1} parent=5 // pred_check_branch
      %111 = sbr.rel (%p108) target = $region12
    $region11: #{tpu_custom_call.1} parent=5 // pred_region
      %s112 = ssub.s32 %s8, 1
      // Predicated region
      $region13: #{tpu_custom_call.1} parent=11 // pred_check
        %p113 = pneg %p72
      $region14: #{tpu_custom_call.1} parent=11 // pred_check_branch
        %115 = sbr.rel (%p113) target = $region16
      $region15: #{tpu_custom_call.1} parent=11 // pred_region
        %s116 = smul.u32 16, %s18
        %p117 = scmp.lt.s32.totalorder %s116, 15
        %s118 = scalar_select %p117, %s116, 15
        %s119 = smul.addr %s118, 8
        %s120 = scalar_lea.vmem %s1, %s119
        %s121 = smul.u32 16, %s18
      $region16: #{tpu_custom_call.1} parent=11 // pred_fallthru
        _
    $region12: #{tpu_custom_call.1} parent=5 // pred_fallthru
      _
    %p122 = scmp.lt.s32.totalorder %s8, 2
    // Predicated region
    $region17: #{tpu_custom_call.1} parent=5 // pred_check
      %p123 = pneg %p122
    $region18: #{tpu_custom_call.1} parent=5 // pred_check_branch
      %125 = sbr.rel (%p123) target = $region20
    $region19: #{tpu_custom_call.1} parent=5 // pred_region
      // Predicated region
      $region21: #{tpu_custom_call.1} parent=19 // pred_check
        %p126 = pneg %p40
      $region22: #{tpu_custom_call.1} parent=19 // pred_check_branch
        %128 = sbr.rel (%p126) target = $region24
      $region23: #{tpu_custom_call.1} parent=19 // pred_region
        %s129 = smul.u32 8, %s15
        %p130 = scmp.lt.s32.totalorder %s129, 15
        %s131 = scalar_select %p130, %s129, 15
        %s132 = smul.addr %s131, 8
        %s133 = scalar_lea.vmem %s0, %s132
        %s134 = smul.u32 8, %s15
      $region24: #{tpu_custom_call.1} parent=19 // pred_fallthru
        _
    $region20: #{tpu_custom_call.1} parent=5 // pred_fallthru
      _
    %p135 = scmp.le.s32.totalorder 1, %s8
    %p136 = scmp.lt.s32.totalorder %s8, 3
    %p137 = pnand %p135, %p136
    %p138 = pneg %p137
    // Predicated region
    $region25: #{tpu_custom_call.1} parent=5 // pred_check
      _
    $region26: #{tpu_custom_call.1} parent=5 // pred_check_branch
      %140 = sbr.rel (%p137) target = $region28
    $region27: #{tpu_custom_call.1} parent=5 // pred_region
      %s141 = ssub.s32 %s8, 1
      %s142 = smul.u32 8, %s17
      %p143 = scmp.lt.s32.totalorder %s142, 15
      %s144 = scalar_select %p143, %s142, 15
      %s145 = smul.addr %s144, 8
      %s146 = scalar_lea.vmem %s0, %s145
      %p147 = pneg %p46
      %p148 = pneg %p43
      %s149 = smul.u32 16, %s18
      %p150 = scmp.lt.s32.totalorder %s149, 15
      %s151 = scalar_select %p150, %s149, 15
      %s152 = smul.addr %s151, 8
      %s153 = scalar_lea.vmem %s1, %s152
      %p154 = pneg %p72
      %p155 = pneg %p69
      %p156 = pneg %p98
      %p157 = pneg %p95
      %s158 = smul.u32 8, %s17
      %p159 = scmp.lt.s32.totalorder %s158, 15
      %s160 = scalar_select %p159, %s158, 15
      %s161 = smul.addr %s160, 8
      %s162 = scalar_lea.vmem %s2, %s161
      %s163 = smul.u32 8, %s17
      %p164 = scmp.lt.s32.totalorder %s163, 15
      %s165 = scalar_select %p164, %s163, 15
      %s166 = smul.addr %s165, 8
      %s167 = scalar_lea.vmem %s0, %s166
      %s168 = smul.u32 8, %s17
      %s169 = smul.u32 16, %s18
      %p170 = scmp.lt.s32.totalorder %s169, 15
      %s171 = scalar_select %p170, %s169, 15
      %s172 = smul.addr %s171, 8
      %s173 = scalar_lea.vmem %s1, %s172
      %s174 = smul.u32 16, %s18
      %s175 = smul.u32 8, %s17
      %p176 = scmp.lt.s32.totalorder %s175, 15
      %s177 = scalar_select %p176, %s175, 15
      %s178 = smul.addr %s177, 8
      %s179 = scalar_lea.vmem %s2, %s178
      %s180 = smul.u32 8, %s17
      %p181 = scmp.eq.s32.totalorder %s18, 0
      // Predicated region
      $region29: #{tpu_custom_call.1} parent=27 // pred_check
        %p182 = pneg %p181
      $region30: #{tpu_custom_call.1} parent=27 // pred_check_branch
        %184 = sbr.rel (%p182) target = $region32
      $region31: #{tpu_custom_call.1} parent=27 // pred_region
        %vm185 = vcmask 7168
        %186 = vst.msk [vmem:[#allocation2] sm:$0xff] %vm185, -1e+30
        %187 = vst.msk [vmem:[#allocation2 + $0x8] sm:$0xff] %vm185, -1e+30
        %188 = vst.msk [vmem:[#allocation2 + $0x10] sm:$0xff] %vm185, -1e+30
        %189 = vst.msk [vmem:[#allocation2 + $0x18] sm:$0xff] %vm185, -1e+30
        %190 = vst.msk [vmem:[#allocation2 + $0x20] sm:$0xff] %vm185, -1e+30
        %191 = vst.msk [vmem:[#allocation2 + $0x28] sm:$0xff] %vm185, -1e+30
        %192 = vst.msk [vmem:[#allocation2 + $0x30] sm:$0xff] %vm185, -1e+30
        %193 = vst.msk [vmem:[#allocation2 + $0x38] sm:$0xff] %vm185, -1e+30
        %194 = vst.msk [vmem:[#allocation3] sm:$0xff] %vm185, 0.0
        %195 = vst.msk [vmem:[#allocation3 + $0x8] sm:$0xff] %vm185, 0.0
        %196 = vst.msk [vmem:[#allocation3 + $0x10] sm:$0xff] %vm185, 0.0
        %197 = vst.msk [vmem:[#allocation3 + $0x18] sm:$0xff] %vm185, 0.0
        %198 = vst.msk [vmem:[#allocation3 + $0x20] sm:$0xff] %vm185, 0.0
        %199 = vst.msk [vmem:[#allocation3 + $0x28] sm:$0xff] %vm185, 0.0
        %200 = vst.msk [vmem:[#allocation3 + $0x30] sm:$0xff] %vm185, 0.0
        %201 = vst.msk [vmem:[#allocation3 + $0x38] sm:$0xff] %vm185, 0.0
      $region32: #{tpu_custom_call.1} parent=27 // pred_fallthru
        _
      %v202 = vld [vmem:[%s167] sm:$0xff]
      %v203 = vld [vmem:[%s167 + $0x8] sm:$0xff]
      %v204 = vld [vmem:[%s167 + $0x10] sm:$0xff]
      %v205 = vld [vmem:[%s167 + $0x18] sm:$0xff]
      %v206 = vld [vmem:[%s167 + $0x20] sm:$0xff]
      %v207 = vld [vmem:[%s167 + $0x28] sm:$0xff]
      %v208 = vld [vmem:[%s167 + $0x30] sm:$0xff]
      %v209 = vld [vmem:[%s167 + $0x38] sm:$0xff]
      %v210 = vld [vmem:[%s173] sm:$0xff]
      %v211 = vld [vmem:[%s173 + $0x8] sm:$0xff]
      %v212 = vld [vmem:[%s173 + $0x10] sm:$0xff]
      %v213 = vld [vmem:[%s173 + $0x18] sm:$0xff]
      %v214 = vld [vmem:[%s173 + $0x20] sm:$0xff]
      %v215 = vld [vmem:[%s173 + $0x28] sm:$0xff]
      %v216 = vld [vmem:[%s173 + $0x30] sm:$0xff]
      %v217 = vld [vmem:[%s173 + $0x38] sm:$0xff]
      %v218 = vld [vmem:[%s173 + $0x40] sm:$0xff]
      %v219 = vld [vmem:[%s173 + $0x48] sm:$0xff]
      %v220 = vld [vmem:[%s173 + $0x50] sm:$0xff]
      %v221 = vld [vmem:[%s173 + $0x58] sm:$0xff]
      %v222 = vld [vmem:[%s173 + $0x60] sm:$0xff]
      %v223 = vld [vmem:[%s173 + $0x68] sm:$0xff]
      %v224 = vld [vmem:[%s173 + $0x70] sm:$0xff]
      %v225 = vld [vmem:[%s173 + $0x78] sm:$0xff]
      %vm226 = vcmask 261120
      %v228 = vsel %vm226, %v202, 0
      %v231 = vsel %vm226, %v203, 0
      %v234 = vsel %vm226, %v204, 0
      %v237 = vsel %vm226, %v205, 0
      %v240 = vsel %vm226, %v206, 0
      %v243 = vsel %vm226, %v207, 0
      %v246 = vsel %vm226, %v208, 0
      %v249 = vsel %vm226, %v209, 0
      %v252 = vsel %vm226, %v210, 0
      %v255 = vsel %vm226, %v211, 0
      %v258 = vsel %vm226, %v212, 0
      %v261 = vsel %vm226, %v213, 0
      %v264 = vsel %vm226, %v214, 0
      %v267 = vsel %vm226, %v215, 0
      %v270 = vsel %vm226, %v216, 0
      %v273 = vsel %vm226, %v217, 0
      %v276 = vsel %vm226, %v218, 0
      %v279 = vsel %vm226, %v219, 0
      %v282 = vsel %vm226, %v220, 0
      %v285 = vsel %vm226, %v221, 0
      %v288 = vsel %vm226, %v222, 0
      %v291 = vsel %vm226, %v223, 0
      %v294 = vsel %vm226, %v224, 0
      %v297 = vsel %vm226, %v225, 0
      %299 = vmatprep.subr.mxu0 0.0
      %v300 = vand.u32 %v252, 4294901760
      %301 = vmatpush1.xpose.msra.mxu0 %v300
      %302 = vmatprep.subr.mxu0 0.0
      %v303 = vand.u32 %v255, 4294901760
      %304 = vmatpush1.xpose.msra.mxu0 %v303
      %305 = vmatprep.subr.mxu0 0.0
      %v306 = vand.u32 %v258, 4294901760
      %307 = vmatpush1.xpose.msra.mxu0 %v306
      %308 = vmatprep.subr.mxu0 0.0
      %v309 = vand.u32 %v261, 4294901760
      %310 = vmatpush1.xpose.msra.mxu0 %v309
      %311 = vmatprep.subr.mxu0 0.0
      %v312 = vand.u32 %v264, 4294901760
      %313 = vmatpush1.xpose.msra.mxu0 %v312
      %314 = vmatprep.subr.mxu0 0.0
      %v315 = vand.u32 %v267, 4294901760
      %316 = vmatpush1.xpose.msra.mxu0 %v315
      %317 = vmatprep.subr.mxu0 0.0
      %v318 = vand.u32 %v270, 4294901760
      %319 = vmatpush1.xpose.msra.mxu0 %v318
      %320 = vmatprep.subr.mxu0 0.0
      %v321 = vand.u32 %v273, 4294901760
      %322 = vmatpush1.xpose.msra.mxu0 %v321
      %323 = vmatprep.subr.mxu0 0.0
      %v324 = vand.u32 %v276, 4294901760
      %325 = vmatpush1.xpose.msra.mxu0 %v324
      %326 = vmatprep.subr.mxu0 0.0
      %v327 = vand.u32 %v279, 4294901760
      %328 = vmatpush1.xpose.msra.mxu0 %v327
      %329 = vmatprep.subr.mxu0 0.0
      %v330 = vand.u32 %v282, 4294901760
      %331 = vmatpush1.xpose.msra.mxu0 %v330
      %332 = vmatprep.subr.mxu0 0.0
      %v333 = vand.u32 %v285, 4294901760
      %334 = vmatpush1.xpose.msra.mxu0 %v333
      %335 = vmatprep.subr.mxu0 0.0
      %v336 = vand.u32 %v288, 4294901760
      %337 = vmatpush1.xpose.msra.mxu0 %v336
      %338 = vmatprep.subr.mxu0 0.0
      %v339 = vand.u32 %v291, 4294901760
      %340 = vmatpush1.xpose.msra.mxu0 %v339
      %341 = vmatprep.subr.mxu0 0.0
      %v342 = vand.u32 %v294, 4294901760
      %343 = vmatpush1.xpose.msra.mxu0 %v342
      %344 = vmatprep.subr.mxu0 0.0
      %v345 = vand.u32 %v297, 4294901760
      %346 = vmatpush1.xpose.msra.mxu0 %v345
      %347 = vmatprep.subr.mxu0 0.0
      %348 = vmatpush1.xpose.msra.mxu0 0.0
      %349 = vmatprep.subr.mxu0 0.0
      %350 = vmatpush1.xpose.msra.mxu0 0.0
      %351 = vmatprep.subr.mxu0 0.0
      %352 = vmatpush1.xpose.msra.mxu0 0.0
      %353 = vmatprep.subr.mxu0 0.0
      %354 = vmatpush1.xpose.msra.mxu0 0.0
      %355 = vmatprep.subr.mxu0 0.0
      %356 = vmatpush1.xpose.msra.mxu0 0.0
      %357 = vmatprep.subr.mxu0 0.0
      %358 = vmatpush1.xpose.msra.mxu0 0.0
      %359 = vmatprep.subr.mxu0 0.0
      %360 = vmatpush1.xpose.msra.mxu0 0.0
      %361 = vmatprep.subr.mxu0 0.0
      %362 = vmatpush1.xpose.msra.mxu0 0.0
      %363 = vmatprep.subr.mxu0 0.0
      %364 = vmatpush1.xpose.msra.mxu0 0.0
      %365 = vmatprep.subr.mxu0 0.0
      %366 = vmatpush1.xpose.msra.mxu0 0.0
      %367 = vmatprep.subr.mxu0 0.0
      %368 = vmatpush1.xpose.msra.mxu0 0.0
      %369 = vmatprep.subr.mxu0 0.0
      %370 = vmatpush1.xpose.msra.mxu0 0.0
      %371 = vmatprep.subr.mxu0 0.0
      %372 = vmatpush1.xpose.msra.mxu0 0.0
      %373 = vmatprep.subr.mxu0 0.0
      %374 = vmatpush1.xpose.msra.mxu0 0.0
      %375 = vmatprep.subr.mxu0 0.0
      %376 = vmatpush1.xpose.msra.mxu0 0.0
      %377 = vmatprep.subr.mxu0 0.0
      %378 = vmatpush1.xpose.msra.mxu0 0.0
      %379 = vmatprep.mubr.f32.mxu0 0.0
      %v380 = vand.u32 %v228, 4294901760
      %v381 = vsub.f32 %v228, %v380
      %v382 = vand.u32 %v381, 4294901760
      %v383 = vsub.f32 %v381, %v382
      %v384 = vand.u32 %v383, 4294901760
      %385 = vmatmul.mubr.f32.gmra.mrb[0].mxu0 %v384
      %v386 = vpop.f32.mrb[0].mxu0
      %v387 = vadd.f32 0.0, %v386
      %v388 = vpop.f32.mrb[0].mxu0
      %389 = vmatprep.mubr.f32.mxu0 0.0
      %v390 = vand.u32 %v231, 4294901760
      %v391 = vsub.f32 %v231, %v390
      %v392 = vand.u32 %v391, 4294901760
      %v393 = vsub.f32 %v391, %v392
      %v394 = vand.u32 %v393, 4294901760
      %395 = vmatmul.mubr.f32.gmra.mrb[0].mxu0 %v394
      %v396 = vpop.f32.mrb[0].mxu0
      %v397 = vadd.f32 0.0, %v396
      %v398 = vpop.f32.mrb[0].mxu0
      %399 = vmatprep.mubr.f32.mxu0 0.0
      %v400 = vand.u32 %v234, 4294901760
      %v401 = vsub.f32 %v234, %v400
      %v402 = vand.u32 %v401, 4294901760
      %v403 = vsub.f32 %v401, %v402
      %v404 = vand.u32 %v403, 4294901760
      %405 = vmatmul.mubr.f32.gmra.mrb[0].mxu0 %v404
      %v406 = vpop.f32.mrb[0].mxu0
      %v407 = vadd.f32 0.0, %v406
      %v408 = vpop.f32.mrb[0].mxu0
      %409 = vmatprep.mubr.f32.mxu0 0.0
      %v410 = vand.u32 %v237, 4294901760
      %v411 = vsub.f32 %v237, %v410
      %v412 = vand.u32 %v411, 4294901760
      %v413 = vsub.f32 %v411, %v412
      %v414 = vand.u32 %v413, 4294901760
      %415 = vmatmul.mubr.f32.gmra.mrb[0].mxu0 %v414
      %v416 = vpop.f32.mrb[0].mxu0
      %v417 = vadd.f32 0.0, %v416
      %v418 = vpop.f32.mrb[0].mxu0
      %419 = vmatprep.mubr.f32.mxu0 0.0
      %v420 = vand.u32 %v240, 4294901760
      %v421 = vsub.f32 %v240, %v420
      %v422 = vand.u32 %v421, 4294901760
      %v423 = vsub.f32 %v421, %v422
      %v424 = vand.u32 %v423, 4294901760
      %425 = vmatmul.mubr.f32.gmra.mrb[0].mxu0 %v424
      %v426 = vpop.f32.mrb[0].mxu0
      %v427 = vadd.f32 0.0, %v426
      %v428 = vpop.f32.mrb[0].mxu0
      %429 = vmatprep.mubr.f32.mxu0 0.0
      %v430 = vand.u32 %v243, 4294901760
      %v431 = vsub.f32 %v243, %v430
      %v432 = vand.u32 %v431, 4294901760
      %v433 = vsub.f32 %v431, %v432
      %v434 = vand.u32 %v433, 4294901760
      %435 = vmatmul.mubr.f32.gmra.mrb[0].mxu0 %v434
      %v436 = vpop.f32.mrb[0].mxu0
      %v437 = vadd.f32 0.0, %v436
      %v438 = vpop.f32.mrb[0].mxu0
      %439 = vmatprep.mubr.f32.mxu0 0.0
      %v440 = vand.u32 %v246, 4294901760
      %v441 = vsub.f32 %v246, %v440
      %v442 = vand.u32 %v441, 4294901760
      %v443 = vsub.f32 %v441, %v442
      %v444 = vand.u32 %v443, 4294901760
      %445 = vmatmul.mubr.f32.gmra.mrb[0].mxu0 %v444
      %v446 = vpop.f32.mrb[0].mxu0
      %v447 = vadd.f32 0.0, %v446
      %v448 = vpop.f32.mrb[0].mxu0
      %449 = vmatprep.mubr.f32.mxu0 0.0
      %v450 = vand.u32 %v249, 4294901760
      %v451 = vsub.f32 %v249, %v450
      %v452 = vand.u32 %v451, 4294901760
      %v453 = vsub.f32 %v451, %v452
      %v454 = vand.u32 %v453, 4294901760
      %455 = vmatmul.mubr.f32.gmra.mrb[0].mxu0 %v454
      %v456 = vpop.f32.mrb[0].mxu0
      %v457 = vadd.f32 0.0, %v456
      %v458 = vpop.f32.mrb[0].mxu0
      %459 = vdwg.mxu0
      %460 = vmatprep.subr.mxu0 0.0
      %v461 = vand.u32 %v252, 4294901760
      %v462 = vsub.f32 %v252, %v461
      %v463 = vand.u32 %v462, 4294901760
      %v464 = vsub.f32 %v462, %v463
      %v465 = vand.u32 %v464, 4294901760
      %466 = vmatpush1.xpose.msra.mxu0 %v465
      %467 = vmatprep.subr.mxu0 0.0
      %v468 = vand.u32 %v255, 4294901760
      %v469 = vsub.f32 %v255, %v468
      %v470 = vand.u32 %v469, 4294901760
      %v471 = vsub.f32 %v469, %v470
      %v472 = vand.u32 %v471, 4294901760
      %473 = vmatpush1.xpose.msra.mxu0 %v472
      %474 = vmatprep.subr.mxu0 0.0
      %v475 = vand.u32 %v258, 4294901760
      %v476 = vsub.f32 %v258, %v475
      %v477 = vand.u32 %v476, 4294901760
      %v478 = vsub.f32 %v476, %v477
      %v479 = vand.u32 %v478, 4294901760
      %480 = vmatpush1.xpose.msra.mxu0 %v479
      %481 = vmatprep.subr.mxu0 0.0
      %v482 = vand.u32 %v261, 4294901760
      %v483 = vsub.f32 %v261, %v482
      %v484 = vand.u32 %v483, 4294901760
      %v485 = vsub.f32 %v483, %v484
      %v486 = vand.u32 %v485, 4294901760
      %487 = vmatpush1.xpose.msra.mxu0 %v486
      %488 = vmatprep.subr.mxu0 0.0
      %v489 = vand.u32 %v264, 4294901760
      %v490 = vsub.f32 %v264, %v489
      %v491 = vand.u32 %v490, 4294901760
      %v492 = vsub.f32 %v490, %v491
      %v493 = vand.u32 %v492, 4294901760
      %494 = vmatpush1.xpose.msra.mxu0 %v493
      %495 = vmatprep.subr.mxu0 0.0
      %v496 = vand.u32 %v267, 4294901760
      %v497 = vsub.f32 %v267, %v496
      %v498 = vand.u32 %v497, 4294901760
      %v499 = vsub.f32 %v497, %v498
      %v500 = vand.u32 %v499, 4294901760
      %501 = vmatpush1.xpose.msra.mxu0 %v500
      %502 = vmatprep.subr.mxu0 0.0
      %v503 = vand.u32 %v270, 4294901760
      %v504 = vsub.f32 %v270, %v503
      %v505 = vand.u32 %v504, 4294901760
      %v506 = vsub.f32 %v504, %v505
      %v507 = vand.u32 %v506, 4294901760
      %508 = vmatpush1.xpose.msra.mxu0 %v507
      %509 = vmatprep.subr.mxu0 0.0
      %v510 = vand.u32 %v273, 4294901760
      %v511 = vsub.f32 %v273, %v510
      %v512 = vand.u32 %v511, 4294901760
      %v513 = vsub.f32 %v511, %v512
      %v514 = vand.u32 %v513, 4294901760
      %515 = vmatpush1.xpose.msra.mxu0 %v514
      %516 = vmatprep.subr.mxu0 0.0
      %v517 = vand.u32 %v276, 4294901760
      %v518 = vsub.f32 %v276, %v517
      %v519 = vand.u32 %v518, 4294901760
      %v520 = vsub.f32 %v518, %v519
      %v521 = vand.u32 %v520, 4294901760
      %522 = vmatpush1.xpose.msra.mxu0 %v521
      %523 = vmatprep.subr.mxu0 0.0
      %v524 = vand.u32 %v279, 4294901760
      %v525 = vsub.f32 %v279, %v524
      %v526 = vand.u32 %v525, 4294901760
      %v527 = vsub.f32 %v525, %v526
      %v528 = vand.u32 %v527, 4294901760
      %529 = vmatpush1.xpose.msra.mxu0 %v528
      %530 = vmatprep.subr.mxu0 0.0
      %v531 = vand.u32 %v282, 4294901760
      %v532 = vsub.f32 %v282, %v531
      %v533 = vand.u32 %v532, 4294901760
      %v534 = vsub.f32 %v532, %v533
      %v535 = vand.u32 %v534, 4294901760
      %536 = vmatpush1.xpose.msra.mxu0 %v535
      %537 = vmatprep.subr.mxu0 0.0
      %v538 = vand.u32 %v285, 4294901760
      %v539 = vsub.f32 %v285, %v538
      %v540 = vand.u32 %v539, 4294901760
      %v541 = vsub.f32 %v539, %v540
      %v542 = vand.u32 %v541, 4294901760
      %543 = vmatpush1.xpose.msra.mxu0 %v542
      %544 = vmatprep.subr.mxu0 0.0
      %v545 = vand.u32 %v288, 4294901760
      %v546 = vsub.f32 %v288, %v545
      %v547 = vand.u32 %v546, 4294901760
      %v548 = vsub.f32 %v546, %v547
      %v549 = vand.u32 %v548, 4294901760
      %550 = vmatpush1.xpose.msra.mxu0 %v549
      %551 = vmatprep.subr.mxu0 0.0
      %v552 = vand.u32 %v291, 4294901760
      %v553 = vsub.f32 %v291, %v552
      %v554 = vand.u32 %v553, 4294901760
      %v555 = vsub.f32 %v553, %v554
      %v556 = vand.u32 %v555, 4294901760
      %557 = vmatpush1.xpose.msra.mxu0 %v556
      %558 = vmatprep.subr.mxu0 0.0
      %v559 = vand.u32 %v294, 4294901760
      %v560 = vsub.f32 %v294, %v559
      %v561 = vand.u32 %v560, 4294901760
      %v562 = vsub.f32 %v560, %v561
      %v563 = vand.u32 %v562, 4294901760
      %564 = vmatpush1.xpose.msra.mxu0 %v563
      %565 = vmatprep.subr.mxu0 0.0
      %v566 = vand.u32 %v297, 4294901760
      %v567 = vsub.f32 %v297, %v566
      %v568 = vand.u32 %v567, 4294901760
      %v569 = vsub.f32 %v567, %v568
      %v570 = vand.u32 %v569, 4294901760
      %571 = vmatpush1.xpose.msra.mxu0 %v570
      %572 = vmatprep.subr.mxu0 0.0
      %573 = vmatpush1.xpose.msra.mxu0 0.0
      %574 = vmatprep.subr.mxu0 0.0
      %575 = vmatpush1.xpose.msra.mxu0 0.0
      %576 = vmatprep.subr.mxu0 0.0
      %577 = vmatpush1.xpose.msra.mxu0 0.0
      %578 = vmatprep.subr.mxu0 0.0
      %579 = vmatpush1.xpose.msra.mxu0 0.0
      %580 = vmatprep.subr.mxu0 0.0
      %581 = vmatpush1.xpose.msra.mxu0 0.0
      %582 = vmatprep.subr.mxu0 0.0
      %583 = vmatpush1.xpose.msra.mxu0 0.0
      %584 = vmatprep.subr.mxu0 0.0
      %585 = vmatpush1.xpose.msra.mxu0 0.0
      %586 = vmatprep.subr.mxu0 0.0
      %587 = vmatpush1.xpose.msra.mxu0 0.0
      %588 = vmatprep.subr.mxu0 0.0
      %589 = vmatpush1.xpose.msra.mxu0 0.0
      %590 = vmatprep.subr.mxu0 0.0
      %591 = vmatpush1.xpose.msra.mxu0 0.0
      %592 = vmatprep.subr.mxu0 0.0
      %593 = vmatpush1.xpose.msra.mxu0 0.0
      %594 = vmatprep.subr.mxu0 0.0
      %595 = vmatpush1.xpose.msra.mxu0 0.0
      %596 = vmatprep.subr.mxu0 0.0
      %597 = vmatpush1.xpose.msra.mxu0 0.0
      %598 = vmatprep.subr.mxu0 0.0
      %599 = vmatpush1.xpose.msra.mxu0 0.0
      %600 = vmatprep.subr.mxu0 0.0
      %601 = vmatpush1.xpose.msra.mxu0 0.0
      %602 = vmatprep.subr.mxu0 0.0
      %603 = vmatpush1.xpose.msra.mxu0 0.0
      %604 = vmatprep.mubr.f32.mxu0 0.0
      %v605 = vand.u32 %v228, 4294901760
      %606 = vmatmul.mubr.f32.gmra.mrb[0].mxu0 %v605
      %v607 = vpop.f32.mrb[0].mxu0
      %v608 = vadd.f32 %v387, %v607
      %v609 = vpop.f32.mrb[0].mxu0
      %610 = vmatprep.mubr.f32.mxu0 0.0
      %v611 = vand.u32 %v231, 4294901760
      %612 = vmatmul.mubr.f32.gmra.mrb[0].mxu0 %v611
      %v613 = vpop.f32.mrb[0].mxu0
      %v614 = vadd.f32 %v397, %v613
      %v615 = vpop.f32.mrb[0].mxu0
      %616 = vmatprep.mubr.f32.mxu0 0.0
      %v617 = vand.u32 %v234, 4294901760
      %618 = vmatmul.mubr.f32.gmra.mrb[0].mxu0 %v617
      %v619 = vpop.f32.mrb[0].mxu0
      %v620 = vadd.f32 %v407, %v619
      %v621 = vpop.f32.mrb[0].mxu0
      %622 = vmatprep.mubr.f32.mxu0 0.0
      %v623 = vand.u32 %v237, 4294901760
      %624 = vmatmul.mubr.f32.gmra.mrb[0].mxu0 %v623
      %v625 = vpop.f32.mrb[0].mxu0
      %v626 = vadd.f32 %v417, %v625
      %v627 = vpop.f32.mrb[0].mxu0
      %628 = vmatprep.mubr.f32.mxu0 0.0
      %v629 = vand.u32 %v240, 4294901760
      %630 = vmatmul.mubr.f32.gmra.mrb[0].mxu0 %v629
      %v631 = vpop.f32.mrb[0].mxu0
      %v632 = vadd.f32 %v427, %v631
      %v633 = vpop.f32.mrb[0].mxu0
      %634 = vmatprep.mubr.f32.mxu0 0.0
      %v635 = vand.u32 %v243, 4294901760
      %636 = vmatmul.mubr.f32.gmra.mrb[0].mxu0 %v635
      %v637 = vpop.f32.mrb[0].mxu0
      %v638 = vadd.f32 %v437, %v637
      %v639 = vpop.f32.mrb[0].mxu0
      %640 = vmatprep.mubr.f32.mxu0 0.0
      %v641 = vand.u32 %v246, 4294901760
      %642 = vmatmul.mubr.f32.gmra.mrb[0].mxu0 %v641
      %v643 = vpop.f32.mrb[0].mxu0
      %v644 = vadd.f32 %v447, %v643
      %v645 = vpop.f32.mrb[0].mxu0
      %646 = vmatprep.mubr.f32.mxu0 0.0
      %v647 = vand.u32 %v249, 4294901760
      %648 = vmatmul.mubr.f32.gmra.mrb[0].mxu0 %v647
      %v649 = vpop.f32.mrb[0].mxu0
      %v650 = vadd.f32 %v457, %v649
      %v651 = vpop.f32.mrb[0].mxu0
      %652 = vdwg.mxu0
      %653 = vmatprep.subr.mxu0 0.0
      %v654 = vand.u32 %v252, 4294901760
      %v655 = vsub.f32 %v252, %v654
      %656 = vmatpush1.xpose.msra.mxu0 %v655
      %657 = vmatprep.subr.mxu0 0.0
      %v658 = vand.u32 %v255, 4294901760
      %v659 = vsub.f32 %v255, %v658
      %660 = vmatpush1.xpose.msra.mxu0 %v659
      %661 = vmatprep.subr.mxu0 0.0
      %v662 = vand.u32 %v258, 4294901760
      %v663 = vsub.f32 %v258, %v662
      %664 = vmatpush1.xpose.msra.mxu0 %v663
      %665 = vmatprep.subr.mxu0 0.0
      %v666 = vand.u32 %v261, 4294901760
      %v667 = vsub.f32 %v261, %v666
      %668 = vmatpush1.xpose.msra.mxu0 %v667
      %669 = vmatprep.subr.mxu0 0.0
      %v670 = vand.u32 %v264, 4294901760
      %v671 = vsub.f32 %v264, %v670
      %672 = vmatpush1.xpose.msra.mxu0 %v671
      %673 = vmatprep.subr.mxu0 0.0
      %v674 = vand.u32 %v267, 4294901760
      %v675 = vsub.f32 %v267, %v674
      %676 = vmatpush1.xpose.msra.mxu0 %v675
      %677 = vmatprep.subr.mxu0 0.0
      %v678 = vand.u32 %v270, 4294901760
      %v679 = vsub.f32 %v270, %v678
      %680 = vmatpush1.xpose.msra.mxu0 %v679
      %681 = vmatprep.subr.mxu0 0.0
      %v682 = vand.u32 %v273, 4294901760
      %v683 = vsub.f32 %v273, %v682
      %684 = vmatpush1.xpose.msra.mxu0 %v683
      %685 = vmatprep.subr.mxu0 0.0
      %v686 = vand.u32 %v276, 4294901760
      %v687 = vsub.f32 %v276, %v686
      %688 = vmatpush1.xpose.msra.mxu0 %v687
      %689 = vmatprep.subr.mxu0 0.0
      %v690 = vand.u32 %v279, 4294901760
      %v691 = vsub.f32 %v279, %v690
      %692 = vmatpush1.xpose.msra.mxu0 %v691
      %693 = vmatprep.subr.mxu0 0.0
      %v694 = vand.u32 %v282, 4294901760
      %v695 = vsub.f32 %v282, %v694
      %696 = vmatpush1.xpose.msra.mxu0 %v695
      %697 = vmatprep.subr.mxu0 0.0
      %v698 = vand.u32 %v285, 4294901760
      %v699 = vsub.f32 %v285, %v698
      %700 = vmatpush1.xpose.msra.mxu0 %v699
      %701 = vmatprep.subr.mxu0 0.0
      %v702 = vand.u32 %v288, 4294901760
      %v703 = vsub.f32 %v288, %v702
      %704 = vmatpush1.xpose.msra.mxu0 %v703
      %705 = vmatprep.subr.mxu0 0.0
      %v706 = vand.u32 %v291, 4294901760
      %v707 = vsub.f32 %v291, %v706
      %708 = vmatpush1.xpose.msra.mxu0 %v707
      %709 = vmatprep.subr.mxu0 0.0
      %v710 = vand.u32 %v294, 4294901760
      %v711 = vsub.f32 %v294, %v710
      %712 = vmatpush1.xpose.msra.mxu0 %v711
      %713 = vmatprep.subr.mxu0 0.0
      %v714 = vand.u32 %v297, 4294901760
      %v715 = vsub.f32 %v297, %v714
      %716 = vmatpush1.xpose.msra.mxu0 %v715
      %717 = vmatprep.subr.mxu0 0.0
      %718 = vmatpush1.xpose.msra.mxu0 0.0
      %719 = vmatprep.subr.mxu0 0.0
      %720 = vmatpush1.xpose.msra.mxu0 0.0
      %721 = vmatprep.subr.mxu0 0.0
      %722 = vmatpush1.xpose.msra.mxu0 0.0
      %723 = vmatprep.subr.mxu0 0.0
      %724 = vmatpush1.xpose.msra.mxu0 0.0
      %725 = vmatprep.subr.mxu0 0.0
      %726 = vmatpush1.xpose.msra.mxu0 0.0
      %727 = vmatprep.subr.mxu0 0.0
      %728 = vmatpush1.xpose.msra.mxu0 0.0
      %729 = vmatprep.subr.mxu0 0.0
      %730 = vmatpush1.xpose.msra.mxu0 0.0
      %731 = vmatprep.subr.mxu0 0.0
      %732 = vmatpush1.xpose.msra.mxu0 0.0
      %733 = vmatprep.subr.mxu0 0.0
      %734 = vmatpush1.xpose.msra.mxu0 0.0
      %735 = vmatprep.subr.mxu0 0.0
      %736 = vmatpush1.xpose.msra.mxu0 0.0
      %737 = vmatprep.subr.mxu0 0.0
      %738 = vmatpush1.xpose.msra.mxu0 0.0
      %739 = vmatprep.subr.mxu0 0.0
      %740 = vmatpush1.xpose.msra.mxu0 0.0
      %741 = vmatprep.subr.mxu0 0.0
      %742 = vmatpush1.xpose.msra.mxu0 0.0
      %743 = vmatprep.subr.mxu0 0.0
      %744 = vmatpush1.xpose.msra.mxu0 0.0
      %745 = vmatprep.subr.mxu0 0.0
      %746 = vmatpush1.xpose.msra.mxu0 0.0
      %747 = vmatprep.subr.mxu0 0.0
      %748 = vmatpush1.xpose.msra.mxu0 0.0
      %749 = vmatprep.mubr.f32.mxu0 0.0
      %v750 = vand.u32 %v228, 4294901760
      %v751 = vsub.f32 %v228, %v750
      %752 = vmatmul.mubr.f32.gmra.mrb[0].mxu0 %v751
      %v753 = vpop.f32.mrb[0].mxu0
      %v754 = vadd.f32 %v608, %v753
      %v755 = vpop.f32.mrb[0].mxu0
      %756 = vmatprep.mubr.f32.mxu0 0.0
      %v757 = vand.u32 %v231, 4294901760
      %v758 = vsub.f32 %v231, %v757
      %759 = vmatmul.mubr.f32.gmra.mrb[0].mxu0 %v758
      %v760 = vpop.f32.mrb[0].mxu0
      %v761 = vadd.f32 %v614, %v760
      %v762 = vpop.f32.mrb[0].mxu0
      %763 = vmatprep.mubr.f32.mxu0 0.0
      %v764 = vand.u32 %v234, 4294901760
      %v765 = vsub.f32 %v234, %v764
      %766 = vmatmul.mubr.f32.gmra.mrb[0].mxu0 %v765
      %v767 = vpop.f32.mrb[0].mxu0
      %v768 = vadd.f32 %v620, %v767
      %v769 = vpop.f32.mrb[0].mxu0
      %770 = vmatprep.mubr.f32.mxu0 0.0
      %v771 = vand.u32 %v237, 4294901760
      %v772 = vsub.f32 %v237, %v771
      %773 = vmatmul.mubr.f32.gmra.mrb[0].mxu0 %v772
      %v774 = vpop.f32.mrb[0].mxu0
      %v775 = vadd.f32 %v626, %v774
      %v776 = vpop.f32.mrb[0].mxu0
      %777 = vmatprep.mubr.f32.mxu0 0.0
      %v778 = vand.u32 %v240, 4294901760
      %v779 = vsub.f32 %v240, %v778
      %780 = vmatmul.mubr.f32.gmra.mrb[0].mxu0 %v779
      %v781 = vpop.f32.mrb[0].mxu0
      %v782 = vadd.f32 %v632, %v781
      %v783 = vpop.f32.mrb[0].mxu0
      %784 = vmatprep.mubr.f32.mxu0 0.0
      %v785 = vand.u32 %v243, 4294901760
      %v786 = vsub.f32 %v243, %v785
      %787 = vmatmul.mubr.f32.gmra.mrb[0].mxu0 %v786
      %v788 = vpop.f32.mrb[0].mxu0
      %v789 = vadd.f32 %v638, %v788
      %v790 = vpop.f32.mrb[0].mxu0
      %791 = vmatprep.mubr.f32.mxu0 0.0
      %v792 = vand.u32 %v246, 4294901760
      %v793 = vsub.f32 %v246, %v792
      %794 = vmatmul.mubr.f32.gmra.mrb[0].mxu0 %v793
      %v795 = vpop.f32.mrb[0].mxu0
      %v796 = vadd.f32 %v644, %v795
      %v797 = vpop.f32.mrb[0].mxu0
      %798 = vmatprep.mubr.f32.mxu0 0.0
      %v799 = vand.u32 %v249, 4294901760
      %v800 = vsub.f32 %v249, %v799
      %801 = vmatmul.mubr.f32.gmra.mrb[0].mxu0 %v800
      %v802 = vpop.f32.mrb[0].mxu0
      %v803 = vadd.f32 %v650, %v802
      %v804 = vpop.f32.mrb[0].mxu0
      %805 = vdwg.mxu0
      %806 = vmatprep.subr.mxu0 0.0
      %v807 = vand.u32 %v252, 4294901760
      %808 = vmatpush1.xpose.msra.mxu0 %v807
      %809 = vmatprep.subr.mxu0 0.0
      %v810 = vand.u32 %v255, 4294901760
      %811 = vmatpush1.xpose.msra.mxu0 %v810
      %812 = vmatprep.subr.mxu0 0.0
      %v813 = vand.u32 %v258, 4294901760
      %814 = vmatpush1.xpose.msra.mxu0 %v813
      %815 = vmatprep.subr.mxu0 0.0
      %v816 = vand.u32 %v261, 4294901760
      %817 = vmatpush1.xpose.msra.mxu0 %v816
      %818 = vmatprep.subr.mxu0 0.0
      %v819 = vand.u32 %v264, 4294901760
      %820 = vmatpush1.xpose.msra.mxu0 %v819
      %821 = vmatprep.subr.mxu0 0.0
      %v822 = vand.u32 %v267, 4294901760
      %823 = vmatpush1.xpose.msra.mxu0 %v822
      %824 = vmatprep.subr.mxu0 0.0
      %v825 = vand.u32 %v270, 4294901760
      %826 = vmatpush1.xpose.msra.mxu0 %v825
      %827 = vmatprep.subr.mxu0 0.0
      %v828 = vand.u32 %v273, 4294901760
      %829 = vmatpush1.xpose.msra.mxu0 %v828
      %830 = vmatprep.subr.mxu0 0.0
      %v831 = vand.u32 %v276, 4294901760
      %832 = vmatpush1.xpose.msra.mxu0 %v831
      %833 = vmatprep.subr.mxu0 0.0
      %v834 = vand.u32 %v279, 4294901760
      %835 = vmatpush1.xpose.msra.mxu0 %v834
      %836 = vmatprep.subr.mxu0 0.0
      %v837 = vand.u32 %v282, 4294901760
      %838 = vmatpush1.xpose.msra.mxu0 %v837
      %839 = vmatprep.subr.mxu0 0.0
      %v840 = vand.u32 %v285, 4294901760
      %841 = vmatpush1.xpose.msra.mxu0 %v840
      %842 = vmatprep.subr.mxu0 0.0
      %v843 = vand.u32 %v288, 4294901760
      %844 = vmatpush1.xpose.msra.mxu0 %v843
      %845 = vmatprep.subr.mxu0 0.0
      %v846 = vand.u32 %v291, 4294901760
      %847 = vmatpush1.xpose.msra.mxu0 %v846
      %848 = vmatprep.subr.mxu0 0.0
      %v849 = vand.u32 %v294, 4294901760
      %850 = vmatpush1.xpose.msra.mxu0 %v849
      %851 = vmatprep.subr.mxu0 0.0
      %v852 = vand.u32 %v297, 4294901760
      %853 = vmatpush1.xpose.msra.mxu0 %v852
      %854 = vmatprep.subr.mxu0 0.0
      %855 = vmatpush1.xpose.msra.mxu0 0.0
      %856 = vmatprep.subr.mxu0 0.0
      %857 = vmatpush1.xpose.msra.mxu0 0.0
      %858 = vmatprep.subr.mxu0 0.0
      %859 = vmatpush1.xpose.msra.mxu0 0.0
      %860 = vmatprep.subr.mxu0 0.0
      %861 = vmatpush1.xpose.msra.mxu0 0.0
      %862 = vmatprep.subr.mxu0 0.0
      %863 = vmatpush1.xpose.msra.mxu0 0.0
      %864 = vmatprep.subr.mxu0 0.0
      %865 = vmatpush1.xpose.msra.mxu0 0.0
      %866 = vmatprep.subr.mxu0 0.0
      %867 = vmatpush1.xpose.msra.mxu0 0.0
      %868 = vmatprep.subr.mxu0 0.0
      %869 = vmatpush1.xpose.msra.mxu0 0.0
      %870 = vmatprep.subr.mxu0 0.0
      %871 = vmatpush1.xpose.msra.mxu0 0.0
      %872 = vmatprep.subr.mxu0 0.0
      %873 = vmatpush1.xpose.msra.mxu0 0.0
      %874 = vmatprep.subr.mxu0 0.0
      %875 = vmatpush1.xpose.msra.mxu0 0.0
      %876 = vmatprep.subr.mxu0 0.0
      %877 = vmatpush1.xpose.msra.mxu0 0.0
      %878 = vmatprep.subr.mxu0 0.0
      %879 = vmatpush1.xpose.msra.mxu0 0.0
      %880 = vmatprep.subr.mxu0 0.0
      %881 = vmatpush1.xpose.msra.mxu0 0.0
      %882 = vmatprep.subr.mxu0 0.0
      %883 = vmatpush1.xpose.msra.mxu0 0.0
      %884 = vmatprep.subr.mxu0 0.0
      %885 = vmatpush1.xpose.msra.mxu0 0.0
      %886 = vmatprep.mubr.f32.mxu0 0.0
      %v887 = vand.u32 %v228, 4294901760
      %v888 = vsub.f32 %v228, %v887
      %v889 = vand.u32 %v888, 4294901760
      %890 = vmatmul.mubr.f32.gmra.mrb[0].mxu0 %v889
      %v891 = vpop.f32.mrb[0].mxu0
      %v892 = vadd.f32 %v754, %v891
      %v893 = vpop.f32.mrb[0].mxu0
      %894 = vmatprep.mubr.f32.mxu0 0.0
      %v895 = vand.u32 %v231, 4294901760
      %v896 = vsub.f32 %v231, %v895
      %v897 = vand.u32 %v896, 4294901760
      %898 = vmatmul.mubr.f32.gmra.mrb[0].mxu0 %v897
      %v899 = vpop.f32.mrb[0].mxu0
      %v900 = vadd.f32 %v761, %v899
      %v901 = vpop.f32.mrb[0].mxu0
      %902 = vmatprep.mubr.f32.mxu0 0.0
      %v903 = vand.u32 %v234, 4294901760
      %v904 = vsub.f32 %v234, %v903
      %v905 = vand.u32 %v904, 4294901760
      %906 = vmatmul.mubr.f32.gmra.mrb[0].mxu0 %v905
      %v907 = vpop.f32.mrb[0].mxu0
      %v908 = vadd.f32 %v768, %v907
      %v909 = vpop.f32.mrb[0].mxu0
      %910 = vmatprep.mubr.f32.mxu0 0.0
      %v911 = vand.u32 %v237, 4294901760
      %v912 = vsub.f32 %v237, %v911
      %v913 = vand.u32 %v912, 4294901760
      %914 = vmatmul.mubr.f32.gmra.mrb[0].mxu0 %v913
      %v915 = vpop.f32.mrb[0].mxu0
      %v916 = vadd.f32 %v775, %v915
      %v917 = vpop.f32.mrb[0].mxu0
      %918 = vmatprep.mubr.f32.mxu0 0.0
      %v919 = vand.u32 %v240, 4294901760
      %v920 = vsub.f32 %v240, %v919
      %v921 = vand.u32 %v920, 4294901760
      %922 = vmatmul.mubr.f32.gmra.mrb[0].mxu0 %v921
      %v923 = vpop.f32.mrb[0].mxu0
      %v924 = vadd.f32 %v782, %v923
      %v925 = vpop.f32.mrb[0].mxu0
      %926 = vmatprep.mubr.f32.mxu0 0.0
      %v927 = vand.u32 %v243, 4294901760
      %v928 = vsub.f32 %v243, %v927
      %v929 = vand.u32 %v928, 4294901760
      %930 = vmatmul.mubr.f32.gmra.mrb[0].mxu0 %v929
      %v931 = vpop.f32.mrb[0].mxu0
      %v932 = vadd.f32 %v789, %v931
      %v933 = vpop.f32.mrb[0].mxu0
      %934 = vmatprep.mubr.f32.mxu0 0.0
      %v935 = vand.u32 %v246, 4294901760
      %v936 = vsub.f32 %v246, %v935
      %v937 = vand.u32 %v936, 4294901760
      %938 = vmatmul.mubr.f32.gmra.mrb[0].mxu0 %v937
      %v939 = vpop.f32.mrb[0].mxu0
      %v940 = vadd.f32 %v796, %v939
      %v941 = vpop.f32.mrb[0].mxu0
      %942 = vmatprep.mubr.f32.mxu0 0.0
      %v943 = vand.u32 %v249, 4294901760
      %v944 = vsub.f32 %v249, %v943
      %v945 = vand.u32 %v944, 4294901760
      %946 = vmatmul.mubr.f32.gmra.mrb[0].mxu0 %v945
      %v947 = vpop.f32.mrb[0].mxu0
      %v948 = vadd.f32 %v803, %v947
      %v949 = vpop.f32.mrb[0].mxu0
      %950 = vdwg.mxu0
      %951 = vmatprep.subr.mxu0 0.0
      %v952 = vand.u32 %v252, 4294901760
      %v953 = vsub.f32 %v252, %v952
      %v954 = vand.u32 %v953, 4294901760
      %955 = vmatpush1.xpose.msra.mxu0 %v954
      %956 = vmatprep.subr.mxu0 0.0
      %v957 = vand.u32 %v255, 4294901760
      %v958 = vsub.f32 %v255, %v957
      %v959 = vand.u32 %v958, 4294901760
      %960 = vmatpush1.xpose.msra.mxu0 %v959
      %961 = vmatprep.subr.mxu0 0.0
      %v962 = vand.u32 %v258, 4294901760
      %v963 = vsub.f32 %v258, %v962
      %v964 = vand.u32 %v963, 4294901760
      %965 = vmatpush1.xpose.msra.mxu0 %v964
      %966 = vmatprep.subr.mxu0 0.0
      %v967 = vand.u32 %v261, 4294901760
      %v968 = vsub.f32 %v261, %v967
      %v969 = vand.u32 %v968, 4294901760
      %970 = vmatpush1.xpose.msra.mxu0 %v969
      %971 = vmatprep.subr.mxu0 0.0
      %v972 = vand.u32 %v264, 4294901760
      %v973 = vsub.f32 %v264, %v972
      %v974 = vand.u32 %v973, 4294901760
      %975 = vmatpush1.xpose.msra.mxu0 %v974
      %976 = vmatprep.subr.mxu0 0.0
      %v977 = vand.u32 %v267, 4294901760
      %v978 = vsub.f32 %v267, %v977
      %v979 = vand.u32 %v978, 4294901760
      %980 = vmatpush1.xpose.msra.mxu0 %v979
      %981 = vmatprep.subr.mxu0 0.0
      %v982 = vand.u32 %v270, 4294901760
      %v983 = vsub.f32 %v270, %v982
      %v984 = vand.u32 %v983, 4294901760
      %985 = vmatpush1.xpose.msra.mxu0 %v984
      %986 = vmatprep.subr.mxu0 0.0
      %v987 = vand.u32 %v273, 4294901760
      %v988 = vsub.f32 %v273, %v987
      %v989 = vand.u32 %v988, 4294901760
      %990 = vmatpush1.xpose.msra.mxu0 %v989
      %991 = vmatprep.subr.mxu0 0.0
      %v992 = vand.u32 %v276, 4294901760
      %v993 = vsub.f32 %v276, %v992
      %v994 = vand.u32 %v993, 4294901760
      %995 = vmatpush1.xpose.msra.mxu0 %v994
      %996 = vmatprep.subr.mxu0 0.0
      %v997 = vand.u32 %v279, 4294901760
      %v998 = vsub.f32 %v279, %v997
      %v999 = vand.u32 %v998, 4294901760
      %1000 = vmatpush1.xpose.msra.mxu0 %v999
      %1001 = vmatprep.subr.mxu0 0.0
      %v1002 = vand.u32 %v282, 4294901760
      %v1003 = vsub.f32 %v282, %v1002
      %v1004 = vand.u32 %v1003, 4294901760
      %1005 = vmatpush1.xpose.msra.mxu0 %v1004
      %1006 = vmatprep.subr.mxu0 0.0
      %v1007 = vand.u32 %v285, 4294901760
      %v1008 = vsub.f32 %v285, %v1007
      %v1009 = vand.u32 %v1008, 4294901760
      %1010 = vmatpush1.xpose.msra.mxu0 %v1009
      %1011 = vmatprep.subr.mxu0 0.0
      %v1012 = vand.u32 %v288, 4294901760
      %v1013 = vsub.f32 %v288, %v1012
      %v1014 = vand.u32 %v1013, 4294901760
      %1015 = vmatpush1.xpose.msra.mxu0 %v1014
      %1016 = vmatprep.subr.mxu0 0.0
      %v1017 = vand.u32 %v291, 4294901760
      %v1018 = vsub.f32 %v291, %v1017
      %v1019 = vand.u32 %v1018, 4294901760
      %1020 = vmatpush1.xpose.msra.mxu0 %v1019
      %1021 = vmatprep.subr.mxu0 0.0
      %v1022 = vand.u32 %v294, 4294901760
      %v1023 = vsub.f32 %v294, %v1022
      %v1024 = vand.u32 %v1023, 4294901760
      %1025 = vmatpush1.xpose.msra.mxu0 %v1024
      %1026 = vmatprep.subr.mxu0 0.0
      %v1027 = vand.u32 %v297, 4294901760
      %v1028 = vsub.f32 %v297, %v1027
      %v1029 = vand.u32 %v1028, 4294901760
      %1030 = vmatpush1.xpose.msra.mxu0 %v1029
      %1031 = vmatprep.subr.mxu0 0.0
      %1032 = vmatpush1.xpose.msra.mxu0 0.0
      %1033 = vmatprep.subr.mxu0 0.0
      %1034 = vmatpush1.xpose.msra.mxu0 0.0
      %1035 = vmatprep.subr.mxu0 0.0
      %1036 = vmatpush1.xpose.msra.mxu0 0.0
      %1037 = vmatprep.subr.mxu0 0.0
      %1038 = vmatpush1.xpose.msra.mxu0 0.0
      %1039 = vmatprep.subr.mxu0 0.0
      %1040 = vmatpush1.xpose.msra.mxu0 0.0
      %1041 = vmatprep.subr.mxu0 0.0
      %1042 = vmatpush1.xpose.msra.mxu0 0.0
      %1043 = vmatprep.subr.mxu0 0.0
      %1044 = vmatpush1.xpose.msra.mxu0 0.0
      %1045 = vmatprep.subr.mxu0 0.0
      %1046 = vmatpush1.xpose.msra.mxu0 0.0
      %1047 = vmatprep.subr.mxu0 0.0
      %1048 = vmatpush1.xpose.msra.mxu0 0.0
      %1049 = vmatprep.subr.mxu0 0.0
      %1050 = vmatpush1.xpose.msra.mxu0 0.0
      %1051 = vmatprep.subr.mxu0 0.0
      %1052 = vmatpush1.xpose.msra.mxu0 0.0
      %1053 = vmatprep.subr.mxu0 0.0
      %1054 = vmatpush1.xpose.msra.mxu0 0.0
      %1055 = vmatprep.subr.mxu0 0.0
      %1056 = vmatpush1.xpose.msra.mxu0 0.0
      %1057 = vmatprep.subr.mxu0 0.0
      %1058 = vmatpush1.xpose.msra.mxu0 0.0
      %1059 = vmatprep.subr.mxu0 0.0
      %1060 = vmatpush1.xpose.msra.mxu0 0.0
      %1061 = vmatprep.subr.mxu0 0.0
      %1062 = vmatpush1.xpose.msra.mxu0 0.0
      %1063 = vmatprep.mubr.f32.mxu0 0.0
      %v1064 = vand.u32 %v228, 4294901760
      %1065 = vmatmul.mubr.f32.gmra.mrb[0].mxu0 %v1064
      %v1066 = vpop.f32.mrb[0].mxu0
      %v1067 = vadd.f32 %v892, %v1066
      %v1068 = vpop.f32.mrb[0].mxu0
      %1069 = vmatprep.mubr.f32.mxu0 0.0
      %v1070 = vand.u32 %v231, 4294901760
      %1071 = vmatmul.mubr.f32.gmra.mrb[0].mxu0 %v1070
      %v1072 = vpop.f32.mrb[0].mxu0
      %v1073 = vadd.f32 %v900, %v1072
      %v1074 = vpop.f32.mrb[0].mxu0
      %1075 = vmatprep.mubr.f32.mxu0 0.0
      %v1076 = vand.u32 %v234, 4294901760
      %1077 = vmatmul.mubr.f32.gmra.mrb[0].mxu0 %v1076
      %v1078 = vpop.f32.mrb[0].mxu0
      %v1079 = vadd.f32 %v908, %v1078
      %v1080 = vpop.f32.mrb[0].mxu0
      %1081 = vmatprep.mubr.f32.mxu0 0.0
      %v1082 = vand.u32 %v237, 4294901760
      %1083 = vmatmul.mubr.f32.gmra.mrb[0].mxu0 %v1082
      %v1084 = vpop.f32.mrb[0].mxu0
      %v1085 = vadd.f32 %v916, %v1084
      %v1086 = vpop.f32.mrb[0].mxu0
      %1087 = vmatprep.mubr.f32.mxu0 0.0
      %v1088 = vand.u32 %v240, 4294901760
      %1089 = vmatmul.mubr.f32.gmra.mrb[0].mxu0 %v1088
      %v1090 = vpop.f32.mrb[0].mxu0
      %v1091 = vadd.f32 %v924, %v1090
      %v1092 = vpop.f32.mrb[0].mxu0
      %1093 = vmatprep.mubr.f32.mxu0 0.0
      %v1094 = vand.u32 %v243, 4294901760
      %1095 = vmatmul.mubr.f32.gmra.mrb[0].mxu0 %v1094
      %v1096 = vpop.f32.mrb[0].mxu0
      %v1097 = vadd.f32 %v932, %v1096
      %v1098 = vpop.f32.mrb[0].mxu0
      %1099 = vmatprep.mubr.f32.mxu0 0.0
      %v1100 = vand.u32 %v246, 4294901760
      %1101 = vmatmul.mubr.f32.gmra.mrb[0].mxu0 %v1100
      %v1102 = vpop.f32.mrb[0].mxu0
      %v1103 = vadd.f32 %v940, %v1102
      %v1104 = vpop.f32.mrb[0].mxu0
      %1105 = vmatprep.mubr.f32.mxu0 0.0
      %v1106 = vand.u32 %v249, 4294901760
      %1107 = vmatmul.mubr.f32.gmra.mrb[0].mxu0 %v1106
      %v1108 = vpop.f32.mrb[0].mxu0
      %v1109 = vadd.f32 %v948, %v1108
      %v1110 = vpop.f32.mrb[0].mxu0
      %1111 = vdwg.mxu0
      %1112 = vmatprep.subr.mxu0 0.0
      %v1113 = vand.u32 %v252, 4294901760
      %1114 = vmatpush1.xpose.msra.mxu0 %v1113
      %1115 = vmatprep.subr.mxu0 0.0
      %v1116 = vand.u32 %v255, 4294901760
      %1117 = vmatpush1.xpose.msra.mxu0 %v1116
      %1118 = vmatprep.subr.mxu0 0.0
      %v1119 = vand.u32 %v258, 4294901760
      %1120 = vmatpush1.xpose.msra.mxu0 %v1119
      %1121 = vmatprep.subr.mxu0 0.0
      %v1122 = vand.u32 %v261, 4294901760
      %1123 = vmatpush1.xpose.msra.mxu0 %v1122
      %1124 = vmatprep.subr.mxu0 0.0
      %v1125 = vand.u32 %v264, 4294901760
      %1126 = vmatpush1.xpose.msra.mxu0 %v1125
      %1127 = vmatprep.subr.mxu0 0.0
      %v1128 = vand.u32 %v267, 4294901760
      %1129 = vmatpush1.xpose.msra.mxu0 %v1128
      %1130 = vmatprep.subr.mxu0 0.0
      %v1131 = vand.u32 %v270, 4294901760
      %1132 = vmatpush1.xpose.msra.mxu0 %v1131
      %1133 = vmatprep.subr.mxu0 0.0
      %v1134 = vand.u32 %v273, 4294901760
      %1135 = vmatpush1.xpose.msra.mxu0 %v1134
      %1136 = vmatprep.subr.mxu0 0.0
      %v1137 = vand.u32 %v276, 4294901760
      %1138 = vmatpush1.xpose.msra.mxu0 %v1137
      %1139 = vmatprep.subr.mxu0 0.0
      %v1140 = vand.u32 %v279, 4294901760
      %1141 = vmatpush1.xpose.msra.mxu0 %v1140
      %1142 = vmatprep.subr.mxu0 0.0
      %v1143 = vand.u32 %v282, 4294901760
      %1144 = vmatpush1.xpose.msra.mxu0 %v1143
      %1145 = vmatprep.subr.mxu0 0.0
      %v1146 = vand.u32 %v285, 4294901760
      %1147 = vmatpush1.xpose.msra.mxu0 %v1146
      %1148 = vmatprep.subr.mxu0 0.0
      %v1149 = vand.u32 %v288, 4294901760
      %1150 = vmatpush1.xpose.msra.mxu0 %v1149
      %1151 = vmatprep.subr.mxu0 0.0
      %v1152 = vand.u32 %v291, 4294901760
      %1153 = vmatpush1.xpose.msra.mxu0 %v1152
      %1154 = vmatprep.subr.mxu0 0.0
      %v1155 = vand.u32 %v294, 4294901760
      %1156 = vmatpush1.xpose.msra.mxu0 %v1155
      %1157 = vmatprep.subr.mxu0 0.0
      %v1158 = vand.u32 %v297, 4294901760
      %1159 = vmatpush1.xpose.msra.mxu0 %v1158
      %1160 = vmatprep.subr.mxu0 0.0
      %1161 = vmatpush1.xpose.msra.mxu0 0.0
      %1162 = vmatprep.subr.mxu0 0.0
      %1163 = vmatpush1.xpose.msra.mxu0 0.0
      %1164 = vmatprep.subr.mxu0 0.0
      %1165 = vmatpush1.xpose.msra.mxu0 0.0
      %1166 = vmatprep.subr.mxu0 0.0
      %1167 = vmatpush1.xpose.msra.mxu0 0.0
      %1168 = vmatprep.subr.mxu0 0.0
      %1169 = vmatpush1.xpose.msra.mxu0 0.0
      %1170 = vmatprep.subr.mxu0 0.0
      %1171 = vmatpush1.xpose.msra.mxu0 0.0
      %1172 = vmatprep.subr.mxu0 0.0
      %1173 = vmatpush1.xpose.msra.mxu0 0.0
      %1174 = vmatprep.subr.mxu0 0.0
      %1175 = vmatpush1.xpose.msra.mxu0 0.0
      %1176 = vmatprep.subr.mxu0 0.0
      %1177 = vmatpush1.xpose.msra.mxu0 0.0
      %1178 = vmatprep.subr.mxu0 0.0
      %1179 = vmatpush1.xpose.msra.mxu0 0.0
      %1180 = vmatprep.subr.mxu0 0.0
      %1181 = vmatpush1.xpose.msra.mxu0 0.0
      %1182 = vmatprep.subr.mxu0 0.0
      %1183 = vmatpush1.xpose.msra.mxu0 0.0
      %1184 = vmatprep.subr.mxu0 0.0
      %1185 = vmatpush1.xpose.msra.mxu0 0.0
      %1186 = vmatprep.subr.mxu0 0.0
      %1187 = vmatpush1.xpose.msra.mxu0 0.0
      %1188 = vmatprep.subr.mxu0 0.0
      %1189 = vmatpush1.xpose.msra.mxu0 0.0
      %1190 = vmatprep.subr.mxu0 0.0
      %1191 = vmatpush1.xpose.msra.mxu0 0.0
      %1192 = vmatprep.mubr.f32.mxu0 0.0
      %v1193 = vand.u32 %v228, 4294901760
      %1194 = vmatmul.mubr.f32.gmra.mrb[0].mxu0 %v1193
      %v1195 = vpop.f32.mrb[0].mxu0
      %v1196 = vadd.f32 %v1067, %v1195
      %v1197 = vpop.f32.mrb[0].mxu0
      %1198 = vmatprep.mubr.f32.mxu0 0.0
      %v1199 = vand.u32 %v231, 4294901760
      %1200 = vmatmul.mubr.f32.gmra.mrb[0].mxu0 %v1199
      %v1201 = vpop.f32.mrb[0].mxu0
      %v1202 = vadd.f32 %v1073, %v1201
      %v1203 = vpop.f32.mrb[0].mxu0
      %1204 = vmatprep.mubr.f32.mxu0 0.0
      %v1205 = vand.u32 %v234, 4294901760
      %1206 = vmatmul.mubr.f32.gmra.mrb[0].mxu0 %v1205
      %v1207 = vpop.f32.mrb[0].mxu0
      %v1208 = vadd.f32 %v1079, %v1207
      %v1209 = vpop.f32.mrb[0].mxu0
      %1210 = vmatprep.mubr.f32.mxu0 0.0
      %v1211 = vand.u32 %v237, 4294901760
      %1212 = vmatmul.mubr.f32.gmra.mrb[0].mxu0 %v1211
      %v1213 = vpop.f32.mrb[0].mxu0
      %v1214 = vadd.f32 %v1085, %v1213
      %v1215 = vpop.f32.mrb[0].mxu0
      %1216 = vmatprep.mubr.f32.mxu0 0.0
      %v1217 = vand.u32 %v240, 4294901760
      %1218 = vmatmul.mubr.f32.gmra.mrb[0].mxu0 %v1217
      %v1219 = vpop.f32.mrb[0].mxu0
      %v1220 = vadd.f32 %v1091, %v1219
      %v1221 = vpop.f32.mrb[0].mxu0
      %1222 = vmatprep.mubr.f32.mxu0 0.0
      %v1223 = vand.u32 %v243, 4294901760
      %1224 = vmatmul.mubr.f32.gmra.mrb[0].mxu0 %v1223
      %v1225 = vpop.f32.mrb[0].mxu0
      %v1226 = vadd.f32 %v1097, %v1225
      %v1227 = vpop.f32.mrb[0].mxu0
      %1228 = vmatprep.mubr.f32.mxu0 0.0
      %v1229 = vand.u32 %v246, 4294901760
      %1230 = vmatmul.mubr.f32.gmra.mrb[0].mxu0 %v1229
      %v1231 = vpop.f32.mrb[0].mxu0
      %v1232 = vadd.f32 %v1103, %v1231
      %v1233 = vpop.f32.mrb[0].mxu0
      %1234 = vmatprep.mubr.f32.mxu0 0.0
      %v1235 = vand.u32 %v249, 4294901760
      %1236 = vmatmul.mubr.f32.gmra.mrb[0].mxu0 %v1235
      %v1237 = vpop.f32.mrb[0].mxu0
      %v1238 = vadd.f32 %v1109, %v1237
      %v1239 = vpop.f32.mrb[0].mxu0
      %1240 = vdwg.mxu0
      %s1241 = smul.u32 %s17, 64
      %s1242 = smul.u32 %s18, 128
      %v1243 = vlaneseq
      %v1244 = vshrl.u32 %v1243, 7
      %v1245 = vadd.s32 %v1244, 8
      %v1246 = vadd.s32 %v1244, 16
      %v1247 = vadd.s32 %v1244, 24
      %v1248 = vadd.s32 %v1244, 32
      %v1249 = vadd.s32 %v1244, 40
      %v1250 = vadd.s32 %v1244, 48
      %v1251 = vadd.s32 %v1244, 56
      %v1252 = vstv %s1241
      %v1253 = vadd.s32 %v1252, %v1244
      %v1254 = vadd.s32 %v1252, %v1245
      %v1255 = vadd.s32 %v1252, %v1246
      %v1256 = vadd.s32 %v1252, %v1247
      %v1257 = vadd.s32 %v1252, %v1248
      %v1258 = vadd.s32 %v1252, %v1249
      %v1259 = vadd.s32 %v1252, %v1250
      %v1260 = vadd.s32 %v1252, %v1251
      %v1261 = vlaneseq
      %v1262 = vand.u32 %v1261, 127
      %v1263 = vstv %s1242
      %v1264 = vadd.s32 %v1263, %v1262
      %vm1265 = vcmp.eq.s32.totalorder %v1253, %v1264
      %vm1266 = vcmp.eq.s32.totalorder %v1254, %v1264
      %vm1267 = vcmp.eq.s32.totalorder %v1255, %v1264
      %vm1268 = vcmp.eq.s32.totalorder %v1256, %v1264
      %vm1269 = vcmp.eq.s32.totalorder %v1257, %v1264
      %vm1270 = vcmp.eq.s32.totalorder %v1258, %v1264
      %vm1271 = vcmp.eq.s32.totalorder %v1259, %v1264
      %vm1272 = vcmp.eq.s32.totalorder %v1260, %v1264
      %vm1273 = vcmp.ge.s32.totalorder %v1264, 16
      %vm1274 = vmor %vm1265, %vm1273
      %vm1275 = vmor %vm1266, %vm1273
      %vm1276 = vmor %vm1267, %vm1273
      %vm1277 = vmor %vm1268, %vm1273
      %vm1278 = vmor %vm1269, %vm1273
      %vm1279 = vmor %vm1270, %vm1273
      %vm1280 = vmor %vm1271, %vm1273
      %vm1281 = vmor %vm1272, %vm1273
      %v1282 = vsel %vm1274, -1e+30, %v1196
      %v1283 = vsel %vm1275, -1e+30, %v1202
      %v1284 = vsel %vm1276, -1e+30, %v1208
      %v1285 = vsel %vm1277, -1e+30, %v1214
      %v1286 = vsel %vm1278, -1e+30, %v1220
      %v1287 = vsel %vm1279, -1e+30, %v1226
      %v1288 = vsel %vm1280, -1e+30, %v1232
      %v1289 = vsel %vm1281, -1e+30, %v1238
      %v1290 = vld [vmem:[#allocation2] sm:$0xff]
      %v1291 = vld [vmem:[#allocation2 + $0x8] sm:$0xff]
      %v1292 = vld [vmem:[#allocation2 + $0x10] sm:$0xff]
      %v1293 = vld [vmem:[#allocation2 + $0x18] sm:$0xff]
      %v1294 = vld [vmem:[#allocation2 + $0x20] sm:$0xff]
      %v1295 = vld [vmem:[#allocation2 + $0x28] sm:$0xff]
      %v1296 = vld [vmem:[#allocation2 + $0x30] sm:$0xff]
      %v1297 = vld [vmem:[#allocation2 + $0x38] sm:$0xff]
      %1298 = vmax.xlane.f32.xlu0 %v1282
      %v1299 = vpop.xlane.xlu0 %1298
      %1300 = vmax.xlane.f32.xlu0 %v1283
      %v1301 = vpop.xlane.xlu0 %1300
      %1302 = vmax.xlane.f32.xlu0 %v1284
      %v1303 = vpop.xlane.xlu0 %1302
      %1304 = vmax.xlane.f32.xlu0 %v1285
      %v1305 = vpop.xlane.xlu0 %1304
      %1306 = vmax.xlane.f32.xlu0 %v1286
      %v1307 = vpop.xlane.xlu0 %1306
      %1308 = vmax.xlane.f32.xlu0 %v1287
      %v1309 = vpop.xlane.xlu0 %1308
      %1310 = vmax.xlane.f32.xlu0 %v1288
      %v1311 = vpop.xlane.xlu0 %1310
      %1312 = vmax.xlane.f32.xlu0 %v1289
      %v1313 = vpop.xlane.xlu0 %1312
      %v1314 = vmax.f32 %v1290, %v1299
      %v1315 = vmax.f32 %v1291, %v1301
      %v1316 = vmax.f32 %v1292, %v1303
      %v1317 = vmax.f32 %v1293, %v1305
      %v1318 = vmax.f32 %v1294, %v1307
      %v1319 = vmax.f32 %v1295, %v1309
      %v1320 = vmax.f32 %v1296, %v1311
      %v1321 = vmax.f32 %v1297, %v1313
      %vm1322 = vcmp.gt.f32.partialorder %v1282, -1e+29
      %vm1323 = vcmp.gt.f32.partialorder %v1283, -1e+29
      %vm1324 = vcmp.gt.f32.partialorder %v1284, -1e+29
      %vm1325 = vcmp.gt.f32.partialorder %v1285, -1e+29
      %vm1326 = vcmp.gt.f32.partialorder %v1286, -1e+29
      %vm1327 = vcmp.gt.f32.partialorder %v1287, -1e+29
      %vm1328 = vcmp.gt.f32.partialorder %v1288, -1e+29
      %vm1329 = vcmp.gt.f32.partialorder %v1289, -1e+29
      %1331 = vset.pattern.permute.xlu0 0
      %1332 = vperm.xlu0 %1331, %v1314
      %v1333 = vpop.permute.xlu0 %1332
      %1336 = vset.pattern.permute.xlu0 0
      %1337 = vperm.xlu0 %1336, %v1315
      %v1338 = vpop.permute.xlu0 %1337
      %1341 = vset.pattern.permute.xlu0 0
      %1342 = vperm.xlu0 %1341, %v1316
      %v1343 = vpop.permute.xlu0 %1342
      %1346 = vset.pattern.permute.xlu0 0
      %1347 = vperm.xlu0 %1346, %v1317
      %v1348 = vpop.permute.xlu0 %1347
      %1351 = vset.pattern.permute.xlu0 0
      %1352 = vperm.xlu0 %1351, %v1318
      %v1353 = vpop.permute.xlu0 %1352
      %1356 = vset.pattern.permute.xlu0 0
      %1357 = vperm.xlu0 %1356, %v1319
      %v1358 = vpop.permute.xlu0 %1357
      %1361 = vset.pattern.permute.xlu0 0
      %1362 = vperm.xlu0 %1361, %v1320
      %v1363 = vpop.permute.xlu0 %1362
      %1366 = vset.pattern.permute.xlu0 0
      %1367 = vperm.xlu0 %1366, %v1321
      %v1368 = vpop.permute.xlu0 %1367
      %v1370 = vsub.f32 %v1282, %v1333
      %v1371 = vsub.f32 %v1283, %v1338
      %v1372 = vsub.f32 %v1284, %v1343
      %v1373 = vsub.f32 %v1285, %v1348
      %v1374 = vsub.f32 %v1286, %v1353
      %v1375 = vsub.f32 %v1287, %v1358
      %v1376 = vsub.f32 %v1288, %v1363
      %v1377 = vsub.f32 %v1289, %v1368
      %v1378 = vmul.f32 %v1370, 1.442695
      %v1379 = vpow.pop %v1378
      %v1380 = vmul.f32 %v1371, 1.442695
      %v1381 = vpow.pop %v1380
      %v1382 = vmul.f32 %v1372, 1.442695
      %v1383 = vpow.pop %v1382
      %v1384 = vmul.f32 %v1373, 1.442695
      %v1385 = vpow.pop %v1384
      %v1386 = vmul.f32 %v1374, 1.442695
      %v1387 = vpow.pop %v1386
      %v1388 = vmul.f32 %v1375, 1.442695
      %v1389 = vpow.pop %v1388
      %v1390 = vmul.f32 %v1376, 1.442695
      %v1391 = vpow.pop %v1390
      %v1392 = vmul.f32 %v1377, 1.442695
      %v1393 = vpow.pop %v1392
      %v1394 = vsel %vm1322, %v1379, 0.0
      %v1395 = vsel %vm1323, %v1381, 0.0
      %v1396 = vsel %vm1324, %v1383, 0.0
      %v1397 = vsel %vm1325, %v1385, 0.0
      %v1398 = vsel %vm1326, %v1387, 0.0
      %v1399 = vsel %vm1327, %v1389, 0.0
      %v1400 = vsel %vm1328, %v1391, 0.0
      %v1401 = vsel %vm1329, %v1393, 0.0
      %v1402 = vsub.f32 %v1290, %v1314
      %v1403 = vsub.f32 %v1291, %v1315
      %v1404 = vsub.f32 %v1292, %v1316
      %v1405 = vsub.f32 %v1293, %v1317
      %v1406 = vsub.f32 %v1294, %v1318
      %v1407 = vsub.f32 %v1295, %v1319
      %v1408 = vsub.f32 %v1296, %v1320
      %v1409 = vsub.f32 %v1297, %v1321
      %v1410 = vmul.f32 %v1402, 1.442695
      %v1411 = vpow.pop %v1410
      %v1412 = vmul.f32 %v1403, 1.442695
      %v1413 = vpow.pop %v1412
      %v1414 = vmul.f32 %v1404, 1.442695
      %v1415 = vpow.pop %v1414
      %v1416 = vmul.f32 %v1405, 1.442695
      %v1417 = vpow.pop %v1416
      %v1418 = vmul.f32 %v1406, 1.442695
      %v1419 = vpow.pop %v1418
      %v1420 = vmul.f32 %v1407, 1.442695
      %v1421 = vpow.pop %v1420
      %v1422 = vmul.f32 %v1408, 1.442695
      %v1423 = vpow.pop %v1422
      %v1424 = vmul.f32 %v1409, 1.442695
      %v1425 = vpow.pop %v1424
      %v1426 = vld [vmem:[#allocation3] sm:$0xff]
      %v1427 = vld [vmem:[#allocation3 + $0x8] sm:$0xff]
      %v1428 = vld [vmem:[#allocation3 + $0x10] sm:$0xff]
      %v1429 = vld [vmem:[#allocation3 + $0x18] sm:$0xff]
      %v1430 = vld [vmem:[#allocation3 + $0x20] sm:$0xff]
      %v1431 = vld [vmem:[#allocation3 + $0x28] sm:$0xff]
      %v1432 = vld [vmem:[#allocation3 + $0x30] sm:$0xff]
      %v1433 = vld [vmem:[#allocation3 + $0x38] sm:$0xff]
      %v1434 = vmul.f32 %v1411, %v1426
      %v1435 = vmul.f32 %v1413, %v1427
      %v1436 = vmul.f32 %v1415, %v1428
      %v1437 = vmul.f32 %v1417, %v1429
      %v1438 = vmul.f32 %v1419, %v1430
      %v1439 = vmul.f32 %v1421, %v1431
      %v1440 = vmul.f32 %v1423, %v1432
      %v1441 = vmul.f32 %v1425, %v1433
      %1442 = vadd.xlane.f32.xlu0 %v1394
      %v1443 = vpop.xlane.xlu0 %1442
      %1444 = vadd.xlane.f32.xlu0 %v1395
      %v1445 = vpop.xlane.xlu0 %1444
      %1446 = vadd.xlane.f32.xlu0 %v1396
      %v1447 = vpop.xlane.xlu0 %1446
      %1448 = vadd.xlane.f32.xlu0 %v1397
      %v1449 = vpop.xlane.xlu0 %1448
      %1450 = vadd.xlane.f32.xlu0 %v1398
      %v1451 = vpop.xlane.xlu0 %1450
      %1452 = vadd.xlane.f32.xlu0 %v1399
      %v1453 = vpop.xlane.xlu0 %1452
      %1454 = vadd.xlane.f32.xlu0 %v1400
      %v1455 = vpop.xlane.xlu0 %1454
      %1456 = vadd.xlane.f32.xlu0 %v1401
      %v1457 = vpop.xlane.xlu0 %1456
      %v1458 = vadd.f32 %v1434, %v1443
      %v1459 = vadd.f32 %v1435, %v1445
      %v1460 = vadd.f32 %v1436, %v1447
      %v1461 = vadd.f32 %v1437, %v1449
      %v1462 = vadd.f32 %v1438, %v1451
      %v1463 = vadd.f32 %v1439, %v1453
      %v1464 = vadd.f32 %v1440, %v1455
      %v1465 = vadd.f32 %v1441, %v1457
      %vm1466 = vcmask 7168
      %1467 = vst.msk [vmem:[#allocation3] sm:$0xff] %vm1466, %v1458
      %1468 = vst.msk [vmem:[#allocation3 + $0x8] sm:$0xff] %vm1466, %v1459
      %1469 = vst.msk [vmem:[#allocation3 + $0x10] sm:$0xff] %vm1466, %v1460
      %1470 = vst.msk [vmem:[#allocation3 + $0x18] sm:$0xff] %vm1466, %v1461
      %1471 = vst.msk [vmem:[#allocation3 + $0x20] sm:$0xff] %vm1466, %v1462
      %1472 = vst.msk [vmem:[#allocation3 + $0x28] sm:$0xff] %vm1466, %v1463
      %1473 = vst.msk [vmem:[#allocation3 + $0x30] sm:$0xff] %vm1466, %v1464
      %1474 = vst.msk [vmem:[#allocation3 + $0x38] sm:$0xff] %vm1466, %v1465
      %1475 = vst.msk [vmem:[#allocation2] sm:$0xff] %vm1466, %v1314
      %1476 = vst.msk [vmem:[#allocation2 + $0x8] sm:$0xff] %vm1466, %v1315
      %1477 = vst.msk [vmem:[#allocation2 + $0x10] sm:$0xff] %vm1466, %v1316
      %1478 = vst.msk [vmem:[#allocation2 + $0x18] sm:$0xff] %vm1466, %v1317
      %1479 = vst.msk [vmem:[#allocation2 + $0x20] sm:$0xff] %vm1466, %v1318
      %1480 = vst.msk [vmem:[#allocation2 + $0x28] sm:$0xff] %vm1466, %v1319
      %1481 = vst.msk [vmem:[#allocation2 + $0x30] sm:$0xff] %vm1466, %v1320
      %1482 = vst.msk [vmem:[#allocation2 + $0x38] sm:$0xff] %vm1466, %v1321
      // Predicated region
      $region33: #{tpu_custom_call.1} parent=27 // pred_check
        %p1483 = pneg %p181
      $region34: #{tpu_custom_call.1} parent=27 // pred_check_branch
        %1485 = sbr.rel (%p1483) target = $region36
      $region35: #{tpu_custom_call.1} parent=27 // pred_region
        %v1486 = vld [vmem:[#allocation2] sm:$0xff]
        %v1487 = vld [vmem:[#allocation2 + $0x8] sm:$0xff]
        %v1488 = vld [vmem:[#allocation2 + $0x10] sm:$0xff]
        %v1489 = vld [vmem:[#allocation2 + $0x18] sm:$0xff]
        %v1490 = vld [vmem:[#allocation2 + $0x20] sm:$0xff]
        %v1491 = vld [vmem:[#allocation2 + $0x28] sm:$0xff]
        %v1492 = vld [vmem:[#allocation2 + $0x30] sm:$0xff]
        %v1493 = vld [vmem:[#allocation2 + $0x38] sm:$0xff]
        %v1494 = vld [vmem:[#allocation3] sm:$0xff]
        %v1495 = vld [vmem:[#allocation3 + $0x8] sm:$0xff]
        %v1496 = vld [vmem:[#allocation3 + $0x10] sm:$0xff]
        %v1497 = vld [vmem:[#allocation3 + $0x18] sm:$0xff]
        %v1498 = vld [vmem:[#allocation3 + $0x20] sm:$0xff]
        %v1499 = vld [vmem:[#allocation3 + $0x28] sm:$0xff]
        %v1500 = vld [vmem:[#allocation3 + $0x30] sm:$0xff]
        %v1501 = vld [vmem:[#allocation3 + $0x38] sm:$0xff]
        %v1502 = vlog2.pop %v1494
        %v1503 = vmul.f32 %v1502, 0.6931472
        %v1504 = vlog2.pop %v1495
        %v1505 = vmul.f32 %v1504, 0.6931472
        %v1506 = vlog2.pop %v1496
        %v1507 = vmul.f32 %v1506, 0.6931472
        %v1508 = vlog2.pop %v1497
        %v1509 = vmul.f32 %v1508, 0.6931472
        %v1510 = vlog2.pop %v1498
        %v1511 = vmul.f32 %v1510, 0.6931472
        %v1512 = vlog2.pop %v1499
        %v1513 = vmul.f32 %v1512, 0.6931472
        %v1514 = vlog2.pop %v1500
        %v1515 = vmul.f32 %v1514, 0.6931472
        %v1516 = vlog2.pop %v1501
        %v1517 = vmul.f32 %v1516, 0.6931472
        %v1518 = vadd.f32 %v1486, %v1503
        %v1519 = vadd.f32 %v1487, %v1505
        %v1520 = vadd.f32 %v1488, %v1507
        %v1521 = vadd.f32 %v1489, %v1509
        %v1522 = vadd.f32 %v1490, %v1511
        %v1523 = vadd.f32 %v1491, %v1513
        %v1524 = vadd.f32 %v1492, %v1515
        %v1525 = vadd.f32 %v1493, %v1517
        %1526 = vst.msk [vmem:[%s179] sm:$0xff] %vm1466, %v1518
        %1527 = vst.msk [vmem:[%s179 + $0x8] sm:$0xff] %vm1466, %v1519
        %1528 = vst.msk [vmem:[%s179 + $0x10] sm:$0xff] %vm1466, %v1520
        %1529 = vst.msk [vmem:[%s179 + $0x18] sm:$0xff] %vm1466, %v1521
        %1530 = vst.msk [vmem:[%s179 + $0x20] sm:$0xff] %vm1466, %v1522
        %1531 = vst.msk [vmem:[%s179 + $0x28] sm:$0xff] %vm1466, %v1523
        %1532 = vst.msk [vmem:[%s179 + $0x30] sm:$0xff] %vm1466, %v1524
        %1533 = vst.msk [vmem:[%s179 + $0x38] sm:$0xff] %vm1466, %v1525
      $region36: #{tpu_custom_call.1} parent=27 // pred_fallthru
        _
      %s1534 = smul.u32 8, %s17
      %p1535 = scmp.lt.s32.totalorder %s1534, 15
      %s1536 = scalar_select %p1535, %s1534, 15
      %s1537 = smul.addr %s1536, 8
      %s1538 = scalar_lea.vmem %s2, %s1537
      // Predicated region
      $region37: #{tpu_custom_call.1} parent=27 // pred_check
        %p1539 = pneg %p95
      $region38: #{tpu_custom_call.1} parent=27 // pred_check_branch
        %1541 = sbr.rel (%p1539) target = $region40
      $region39: #{tpu_custom_call.1} parent=27 // pred_region
        %s1542 = smul.u32 8, %s17
      $region40: #{tpu_custom_call.1} parent=27 // pred_fallthru
        _
    $region28: #{tpu_custom_call.1} parent=5 // pred_fallthru
      _
    %p1543 = scmp.le.s32.totalorder 2, %s8
    // Predicated region
    $region41: #{tpu_custom_call.1} parent=5 // pred_check
      %p1544 = pneg %p1543
    $region42: #{tpu_custom_call.1} parent=5 // pred_check_branch
      %1546 = sbr.rel (%p1544) target = $region44
    $region43: #{tpu_custom_call.1} parent=5 // pred_region
      %s1547 = ssub.s32 %s8, 2
      // Predicated region
      $region45: #{tpu_custom_call.1} parent=43 // pred_check
        %p1548 = pneg %p101
      $region46: #{tpu_custom_call.1} parent=43 // pred_check_branch
        %1550 = sbr.rel (%p1548) target = $region48
      $region47: #{tpu_custom_call.1} parent=43 // pred_region
        %s1551 = smul.u32 8, %s19
        %p1552 = scmp.lt.s32.totalorder %s1551, 15
        %s1553 = scalar_select %p1552, %s1551, 15
        %s1554 = smul.addr %s1553, 8
        %s1555 = scalar_lea.vmem %s2, %s1554
      $region48: #{tpu_custom_call.1} parent=43 // pred_fallthru
        _
    $region44: #{tpu_custom_call.1} parent=5 // pred_fallthru
      _
  $region6: #{tpu_custom_call.1} parent=0 // loop_footer
    %s12 = sadd.s32 1, %s8
  $region7: #{tpu_custom_call.1} parent=0 // loop_footer_branch
    %7 = sbr.rel target = $region3
  $region8: #{tpu_custom_call.1} parent=0 // loop_exit
    _

</llo_original>
